<compile_context>
chip_gen: v6e
topology: v6e:2x2x1
jax: 0.10.0
libtpu: 0.0.40
codegen_flags: <defaults>
</compile_context>

<pallas_src>
import functools

import jax
import jax.numpy as jnp
from jax.experimental import pallas as pl
from jax.experimental.pallas import tpu as pltpu

NEG_INF = -1e30
LN_EPS = 1e-5
LEAKY_SLOPE = 0.2           # PyG GATConv default negative_slope

# dot_general dimension numbers (same convention as the official flash-attention kernel)
TRANS_B = (((1,), (1,)), ((), ()))   # a[m,k] . b[n,k] -> [m,n]
TRANS_A = (((0,), (0,)), ((), ()))   # a[k,m] . b[k,n] -> [m,n]


def _visit_gt_kernel(
    x_ref, adjb_ref, poolT_ref,
    w1_ref, a1sT_ref, a1d_ref, b1_ref,
    w2_ref, a2sT_ref, a2d_ref, b2_ref,
    ln_g_ref, ln_b_ref, hmask_ref,
    out_ref,
    hproj, h1_sc, ssrcT1, ssrc2,
    *, num_heads, hidden_dim, tile,
):
    layer = pl.program_id(0)
    t = pl.program_id(1)
    H, HD, T = num_heads, hidden_dim, tile
    N = x_ref.shape[0]

    # ---- once per layer (tile 0): projection + per-source attention scores ---------
    @pl.when((layer == 0) & (t == 0))
    def _():
        out_ref[...] = jnp.zeros_like(out_ref)
        h = jnp.dot(x_ref[...].astype(jnp.bfloat16), w1_ref[...].astype(jnp.bfloat16),
                    preferred_element_type=jnp.float32)                     # [N, HD]
        hproj[...] = h
        # source scores for all heads in ONE (rhs-transposed) matmul -> [H, N]
        ssrcT1[...] = jax.lax.dot_general(a1sT_ref[...], h, TRANS_B,
                                          preferred_element_type=jnp.float32)

    @pl.when((layer == 1) & (t == 0))
    def _():
        h = jnp.dot(h1_sc[...].astype(jnp.bfloat16), w2_ref[...].astype(jnp.bfloat16),
                    preferred_element_type=jnp.float32)                     # [N, HD]
        hproj[...] = h
        ssrc2[...] = jax.lax.dot_general(a2sT_ref[...], h, TRANS_B,
                                         preferred_element_type=jnp.float32)  # [1, N]

    adjb = adjb_ref[...]                                   # [T, N] additive mask (0 / -1e30)
    row0 = pl.multiple_of(t * T, T)
    h_rows = hproj[pl.ds(row0, T), :]                      # [T, HD] this dst tile
    hp_bf = hproj[...].astype(jnp.bfloat16)                # [N, HD] all sources (values)

    # ---- GAT layer 1: 4 heads fused, + ReLU -> rows of h1 ---------------------------
    @pl.when(layer == 0)
    def _():
        s_dst = jnp.dot(h_rows, a1d_ref[...],
                        preferred_element_type=jnp.float32)                 # [T, H]
        e = s_dst[:, :, None] + ssrcT1[...][None, :, :]                     # [T, H, N]
        e = jnp.where(e > 0, e, LEAKY_SLOPE * e) + adjb[:, None, :]
        m = jnp.max(e, axis=-1, keepdims=True)
        p = jnp.exp(e - m)
        alpha = p * pl.reciprocal(jnp.sum(p, axis=-1, keepdims=True), approx=True)
        # ONE MXU push for all heads, then keep each head's own feature block.
        agg = jnp.dot(alpha.reshape(T * H, N).astype(jnp.bfloat16), hp_bf,
                      preferred_element_type=jnp.float32)                   # [T*H, HD]
        agg = jnp.sum(agg.reshape(T, H, HD) * hmask_ref[...][None, :, :], axis=1)
        h1_sc[pl.ds(row0, T), :] = jnp.maximum(agg + b1_ref[...], 0.0)

    # ---- GAT layer 2 (1 head) + LayerNorm + mean-pool accumulation ------------------
    @pl.when(layer == 1)
    def _():
        s_dst = jnp.dot(h_rows, a2d_ref[...],
                        preferred_element_type=jnp.float32)                 # [T, 1]
        e = s_dst + ssrc2[...]                                              # [T, N]
        e = jnp.where(e > 0, e, LEAKY_SLOPE * e) + adjb
        m = jnp.max(e, axis=-1, keepdims=True)
        p = jnp.exp(e - m)
        alpha = p * pl.reciprocal(jnp.sum(p, axis=-1, keepdims=True), approx=True)
        h2 = jnp.dot(alpha.astype(jnp.bfloat16), hp_bf,
                     preferred_element_type=jnp.float32) + b2_ref[...]      # [T, HD]
        mu = jnp.mean(h2, axis=-1, keepdims=True)
        var = jnp.mean((h2 - mu) * (h2 - mu), axis=-1, keepdims=True)
        h2 = (h2 - mu) * jax.lax.rsqrt(var + LN_EPS)
        h2 = h2 * ln_g_ref[...] + ln_b_ref[...]
        # pool[:, tile_rows] @ h2   ([G, T] . [T, HD]), accumulated over dst tiles
        out_ref[...] += jax.lax.dot_general(
            poolT_ref[...].astype(jnp.bfloat16), h2.astype(jnp.bfloat16), TRANS_A,
            preferred_element_type=jnp.float32)


@functools.partial(jax.jit, static_argnames=("num_graphs", "num_heads", "tile"))
def visit_graph_transformer(x, edge_index, batch, params, *,
                            num_graphs, num_heads=4, tile=8):
    """GT-BEHRT visit encoder forward pass on TPU via Pallas (dense adjacency)."""
    n, _ = x.shape
    hidden = params["w2"].shape[1]
    head_dim = hidden // num_heads
    assert hidden % num_heads == 0
    assert n % tile == 0 and (tile % 8 == 0 or tile == n), "dst tile must be 8-aligned"

    # Dense adjacency adj[dst, src] with self-loops (PyG add_self_loops=True), emitted
    # directly as the additive softmax mask: single `+` in-kernel, no dual masking.
    src, dst = edge_index[0], edge_index[1]
    adj = jnp.zeros((n, n), jnp.float32).at[dst, src].set(1.0)
    adj = jnp.maximum(adj, jnp.eye(n, dtype=jnp.float32))
    adj_bias = jnp.where(adj > 0, 0.0, NEG_INF).astype(jnp.float32)

    # Mean-pool matrix, stored transposed [N, G] so it can be row-tiled like adj.
    onehot = (batch[None, :] == jnp.arange(num_graphs)[:, None]).astype(jnp.float32)
    pool_t = (onehot / jnp.sum(onehot, axis=1, keepdims=True)).T            # [N, G]

    # Head-fused attention parameter layouts (built once, at trace time):
    #   a1sT[h, h*C + c] = a1_src[h, c]  -> all-head source scores via one matmul
    #   a1d [h*C + c, h] = a1_dst[h, c]  -> all-head destination scores via one matmul
    #   hmask[h, c']     = 1 iff feature column c' belongs to head h
    H, C = num_heads, head_dim
    eye_h = jnp.eye(H, dtype=jnp.float32)
    a1sT = (params["a1_src"][:, None, :] * eye_h[:, :, None]).reshape(H, hidden)
    a1d = (params["a1_dst"][:, :, None] * eye_h[:, None, :]).reshape(hidden, H)
    a2sT = params["a2_src"]                                                 # [1, hidden]
    a2d = params["a2_dst"].T                                                # [hidden, 1]
    hmask = (jnp.arange(hidden)[None, :] // C == jnp.arange(H)[:, None]).astype(jnp.float32)

    inputs = (x, adj_bias, pool_t,
              params["w1"], a1sT, a1d, params["b1"],
              params["w2"], a2sT, a2d, params["b2"],
              params["ln_gamma"], params["ln_beta"], hmask)

    def _full(a):
        return pl.BlockSpec(a.shape, lambda l, t: (0,) * a.ndim)

    in_specs = [
        _full(x),
        pl.BlockSpec((tile, n), lambda l, t: (t, 0)),             # adj mask: streamed rows
        pl.BlockSpec((tile, num_graphs), lambda l, t: (t, 0)),    # pool^T : streamed rows
    ] + [_full(a) for a in inputs[3:]]

    kernel = functools.partial(
        _visit_gt_kernel, num_heads=num_heads, hidden_dim=hidden, tile=tile)

    return pl.pallas_call(
        kernel,
        out_shape=jax.ShapeDtypeStruct((num_graphs, hidden), jnp.float32),
        grid=(2, n // tile),                        # (layer, dst-node tile)
        in_specs=in_specs,
        out_specs=pl.BlockSpec((num_graphs, hidden), lambda l, t: (0, 0)),
        scratch_shapes=[
            pltpu.VMEM((n, hidden), jnp.float32),      # projected features (per layer)
            pltpu.VMEM((n, hidden), jnp.float32),      # h1 (ReLU'd layer-1 output)
            pltpu.VMEM((num_heads, n), jnp.float32),   # layer-1 source scores, all heads
            pltpu.VMEM((1, n), jnp.float32),           # layer-2 source scores
        ],
        # Sequential on both axes: layer 1 reads h1 written by every layer-0 tile and
        # the pooled output accumulates across tiles.
        compiler_params=pltpu.CompilerParams(
            dimension_semantics=("arbitrary", "arbitrary")),
    )(*inputs)


def init_params(key, input_dim, hidden_dim, num_heads):
    """Deterministic synthetic parameters matching PyG GATConv / LayerNorm shapes."""
    head_dim = hidden_dim // num_heads
    ks = jax.random.split(key, 6)
    scale1 = 1.0 / jnp.sqrt(jnp.float32(input_dim))
    scale2 = 1.0 / jnp.sqrt(jnp.float32(hidden_dim))
    return {
        # GAT layer 1: input_dim -> head_dim per head, 4 heads, concat
        "w1": jax.random.normal(ks[0], (input_dim, num_heads * head_dim), jnp.float32) * scale1,
        "a1_src": jax.random.normal(ks[1], (num_heads, head_dim), jnp.float32) * 0.1,
        "a1_dst": jax.random.normal(ks[2], (num_heads, head_dim), jnp.float32) * 0.1,
        "b1": jnp.zeros((1, num_heads * head_dim), jnp.float32),
        # GAT layer 2: hidden -> hidden, 1 head
        "w2": jax.random.normal(ks[3], (hidden_dim, hidden_dim), jnp.float32) * scale2,
        "a2_src": jax.random.normal(ks[4], (1, hidden_dim), jnp.float32) * 0.1,
        "a2_dst": jax.random.normal(ks[5], (1, hidden_dim), jnp.float32) * 0.1,
        "b2": jnp.zeros((1, hidden_dim), jnp.float32),
        # LayerNorm (layer_norm2)
        "ln_gamma": jnp.ones((1, hidden_dim), jnp.float32),
        "ln_beta": jnp.zeros((1, hidden_dim), jnp.float32),
    }


# ---------------------------- pure-JAX reference (f32) -------------------------------
def _gat_dense_reference(h, adj, att_src, att_dst, bias, num_heads, head_dim):
    outs = []
    for head in range(num_heads):
        hh = h[:, head * head_dim:(head + 1) * head_dim]
        s_src = hh @ att_src[head]
        s_dst = hh @ att_dst[head]
        e = s_dst[:, None] + s_src[None, :]
        e = jnp.where(e > 0, e, LEAKY_SLOPE * e)
        e = jnp.where(adj > 0, e, NEG_INF)
        alpha = jax.nn.softmax(e, axis=-1)
        outs.append(alpha @ hh)
    return jnp.concatenate(outs, axis=-1) + bias


def reference_forward(x, edge_index, batch, params, num_graphs, num_heads):
    n = x.shape[0]
    hidden = params["w2"].shape[1]
    head_dim = hidden // num_heads
    src, dst = edge_index[0], edge_index[1]
    adj = jnp.zeros((n, n), jnp.float32).at[dst, src].set(1.0)
    adj = jnp.maximum(adj, jnp.eye(n, dtype=jnp.float32))
    h1 = jax.nn.relu(_gat_dense_reference(x @ params["w1"], adj,
                                          params["a1_src"], params["a1_dst"],
                                          params["b1"], num_heads, head_dim))
    h2 = _gat_dense_reference(h1 @ params["w2"], adj,
                              params["a2_src"], params["a2_dst"],
                              params["b2"], 1, hidden)
    mu = jnp.mean(h2, axis=-1, keepdims=True)
    var = jnp.mean((h2 - mu) ** 2, axis=-1, keepdims=True)
    h2 = (h2 - mu) * jax.lax.rsqrt(var + LN_EPS) * params["ln_gamma"] + params["ln_beta"]
    onehot = (batch[None, :] == jnp.arange(num_graphs)[:, None]).astype(jnp.float32)
    pool = onehot / jnp.sum(onehot, axis=1, keepdims=True)
    return pool @ h2


if __name__ == "__main__":
    key = jax.random.PRNGKey(0)
    num_nodes = 16        # two visits of 8 medical codes each
    input_dim = 32
    hidden_dim = 32
    num_heads = 4
    num_graphs = 2

    kx, kp = jax.random.split(key)
    x = jax.random.normal(kx, (num_nodes, input_dim), jnp.float32)

    # Bidirectional ring within each visit-graph (COO edge_index, [2, num_edges]).
    edges = []
    for g in range(num_graphs):
        base = g * 8
        for i in range(8):
            a, b = base + i, base + (i + 1) % 8
            edges.append((a, b))
            edges.append((b, a))
    edge_index = jnp.array(edges, dtype=jnp.int32).T               # [2, E]
    batch = jnp.repeat(jnp.arange(num_graphs, dtype=jnp.int32), 8)  # [num_nodes]

    params = init_params(kp, input_dim, hidden_dim, num_heads)

    out = visit_graph_transformer(x, edge_index, batch, params,
                                  num_graphs=num_graphs, num_heads=num_heads, tile=8)
    out = jax.block_until_ready(out)
    ref = reference_forward(x, edge_index, batch, params, num_graphs, num_heads)

    assert out.shape == (num_graphs, hidden_dim)
    assert bool(jnp.all(jnp.isfinite(out)))
    assert bool(jnp.allclose(out, ref, rtol=5e-2, atol=1e-1)), (
        f"max abs err {float(jnp.max(jnp.abs(out - ref)))}")
    print("KERNEL_OK")
</pallas_src>

<mosaic_0001>
module attributes {stable_mosaic.version = 11 : i64} {
  func.func @_visit_gt_kernel(%arg0: i32, %arg1: i32, %arg2: memref<16x32xf32, #tpu.memory_space<vmem>>, %arg3: memref<8x16xf32, #tpu.memory_space<vmem>>, %arg4: memref<8x2xf32, #tpu.memory_space<vmem>>, %arg5: memref<32x32xf32, #tpu.memory_space<vmem>>, %arg6: memref<4x32xf32, #tpu.memory_space<vmem>>, %arg7: memref<32x4xf32, #tpu.memory_space<vmem>>, %arg8: memref<1x32xf32, #tpu.memory_space<vmem>>, %arg9: memref<32x32xf32, #tpu.memory_space<vmem>>, %arg10: memref<1x32xf32, #tpu.memory_space<vmem>>, %arg11: memref<32x1xf32, #tpu.memory_space<vmem>>, %arg12: memref<1x32xf32, #tpu.memory_space<vmem>>, %arg13: memref<1x32xf32, #tpu.memory_space<vmem>>, %arg14: memref<1x32xf32, #tpu.memory_space<vmem>>, %arg15: memref<4x32xf32, #tpu.memory_space<vmem>>, %arg16: memref<2x32xf32, #tpu.memory_space<vmem>>, %arg17: memref<16x32xf32, #tpu.memory_space<vmem>>, %arg18: memref<16x32xf32, #tpu.memory_space<vmem>>, %arg19: memref<4x16xf32, #tpu.memory_space<vmem>>, %arg20: memref<1x16xf32, #tpu.memory_space<vmem>>) attributes {dimension_semantics = [#tpu.dimension_semantics<arbitrary>, #tpu.dimension_semantics<arbitrary>], iteration_bounds = array<i64: 2, 2>, scalar_prefetch = 0 : i64, scratch_operands = 4 : i64, tpu.core_type = #tpu.core_type<tc>, window_params = [{pipeline_mode = #tpu.pipeline_mode<synchronous>, transform_indices = @transform_0, window_bounds = array<i64: 16, 32>}, {transform_indices = @transform_1, window_bounds = array<i64: 8, 16>}, {transform_indices = @transform_2, window_bounds = array<i64: 8, 2>}, {pipeline_mode = #tpu.pipeline_mode<synchronous>, transform_indices = @transform_3, window_bounds = array<i64: 32, 32>}, {pipeline_mode = #tpu.pipeline_mode<synchronous>, transform_indices = @transform_4, window_bounds = array<i64: 4, 32>}, {pipeline_mode = #tpu.pipeline_mode<synchronous>, transform_indices = @transform_5, window_bounds = array<i64: 32, 4>}, {pipeline_mode = #tpu.pipeline_mode<synchronous>, transform_indices = @transform_6, window_bounds = array<i64: 1, 32>}, {pipeline_mode = #tpu.pipeline_mode<synchronous>, transform_indices = @transform_7, window_bounds = array<i64: 32, 32>}, {pipeline_mode = #tpu.pipeline_mode<synchronous>, transform_indices = @transform_8, window_bounds = array<i64: 1, 32>}, {pipeline_mode = #tpu.pipeline_mode<synchronous>, transform_indices = @transform_9, window_bounds = array<i64: 32, 1>}, {pipeline_mode = #tpu.pipeline_mode<synchronous>, transform_indices = @transform_10, window_bounds = array<i64: 1, 32>}, {pipeline_mode = #tpu.pipeline_mode<synchronous>, transform_indices = @transform_11, window_bounds = array<i64: 1, 32>}, {pipeline_mode = #tpu.pipeline_mode<synchronous>, transform_indices = @transform_12, window_bounds = array<i64: 1, 32>}, {pipeline_mode = #tpu.pipeline_mode<synchronous>, transform_indices = @transform_13, window_bounds = array<i64: 4, 32>}, {pipeline_mode = #tpu.pipeline_mode<synchronous>, transform_indices = @transform_14, window_bounds = array<i64: 2, 32>}]} {
    %c0_i32 = arith.constant 0 : i32
    %0 = arith.cmpi eq, %arg0, %c0_i32 : i32
    %c0_i32_0 = arith.constant 0 : i32
    %1 = arith.cmpi eq, %arg1, %c0_i32_0 : i32
    %2 = arith.andi %0, %1 : i1
    %3 = arith.extui %2 : i1 to i32
    %c0_i32_1 = arith.constant 0 : i32
    %4 = arith.cmpi ne, %3, %c0_i32_1 : i32
    scf.if %4 {
      %cst = arith.constant 0.000000e+00 : f32
      %23 = vector.broadcast %cst : f32 to vector<2x32xf32>
      %c0_12 = arith.constant 0 : index
      %c0_13 = arith.constant 0 : index
      %24 = vector.load %arg16[%c0_12, %c0_13] : memref<2x32xf32, #tpu.memory_space<vmem>>, vector<2x32xf32>
      tpu.vector_store %arg16[%c0_12, %c0_13], %23 {strides = array<i32>} : memref<2x32xf32, #tpu.memory_space<vmem>>, vector<2x32xf32>,
      %c0_14 = arith.constant 0 : index
      %c0_15 = arith.constant 0 : index
      %25 = vector.load %arg2[%c0_14, %c0_15] : memref<16x32xf32, #tpu.memory_space<vmem>>, vector<16x32xf32>
      %26 = arith.truncf %25 : vector<16x32xf32> to vector<16x32xbf16>
      %c0_16 = arith.constant 0 : index
      %c0_17 = arith.constant 0 : index
      %27 = vector.load %arg5[%c0_16, %c0_17] : memref<32x32xf32, #tpu.memory_space<vmem>>, vector<32x32xf32>
      %28 = arith.truncf %27 : vector<32x32xf32> to vector<32x32xbf16>
      %cst_18 = arith.constant dense<0.000000e+00> : vector<16x32xf32>
      %29 = tpu.matmul %26, %28, %cst_18 {dimension_numbers = #tpu.dot_dimension_numbers<[1], [0], [0], [1], [0, 0, 1, 1], [], []>} : vector<16x32xbf16>, vector<32x32xbf16>, vector<16x32xf32> -> vector<16x32xf32>
      %c0_19 = arith.constant 0 : index
      %c0_20 = arith.constant 0 : index
      %30 = vector.load %arg17[%c0_19, %c0_20] : memref<16x32xf32, #tpu.memory_space<vmem>>, vector<16x32xf32>
      tpu.vector_store %arg17[%c0_19, %c0_20], %29 {strides = array<i32>} : memref<16x32xf32, #tpu.memory_space<vmem>>, vector<16x32xf32>,
      %c0_21 = arith.constant 0 : index
      %c0_22 = arith.constant 0 : index
      %31 = vector.load %arg6[%c0_21, %c0_22] : memref<4x32xf32, #tpu.memory_space<vmem>>, vector<4x32xf32>
      %cst_23 = arith.constant dense<0.000000e+00> : vector<4x16xf32>
      %32 = tpu.matmul %31, %29, %cst_23 {dimension_numbers = #tpu.dot_dimension_numbers<[1], [1], [0], [0], [0, 0, 1, 0], [], []>} : vector<4x32xf32>, vector<16x32xf32>, vector<4x16xf32> -> vector<4x16xf32>
      %c0_24 = arith.constant 0 : index
      %c0_25 = arith.constant 0 : index
      %33 = vector.load %arg19[%c0_24, %c0_25] : memref<4x16xf32, #tpu.memory_space<vmem>>, vector<4x16xf32>
      tpu.vector_store %arg19[%c0_24, %c0_25], %32 {strides = array<i32>} : memref<4x16xf32, #tpu.memory_space<vmem>>, vector<4x16xf32>,
    } else {
    }
    %c1_i32 = arith.constant 1 : i32
    %5 = arith.cmpi eq, %arg0, %c1_i32 : i32
    %c0_i32_2 = arith.constant 0 : i32
    %6 = arith.cmpi eq, %arg1, %c0_i32_2 : i32
    %7 = arith.andi %5, %6 : i1
    %8 = arith.extui %7 : i1 to i32
    %c0_i32_3 = arith.constant 0 : i32
    %9 = arith.cmpi ne, %8, %c0_i32_3 : i32
    scf.if %9 {
      %c0_12 = arith.constant 0 : index
      %c0_13 = arith.constant 0 : index
      %23 = vector.load %arg18[%c0_12, %c0_13] : memref<16x32xf32, #tpu.memory_space<vmem>>, vector<16x32xf32>
      %24 = arith.truncf %23 : vector<16x32xf32> to vector<16x32xbf16>
      %c0_14 = arith.constant 0 : index
      %c0_15 = arith.constant 0 : index
      %25 = vector.load %arg9[%c0_14, %c0_15] : memref<32x32xf32, #tpu.memory_space<vmem>>, vector<32x32xf32>
      %26 = arith.truncf %25 : vector<32x32xf32> to vector<32x32xbf16>
      %cst = arith.constant dense<0.000000e+00> : vector<16x32xf32>
      %27 = tpu.matmul %24, %26, %cst {dimension_numbers = #tpu.dot_dimension_numbers<[1], [0], [0], [1], [0, 0, 1, 1], [], []>} : vector<16x32xbf16>, vector<32x32xbf16>, vector<16x32xf32> -> vector<16x32xf32>
      %c0_16 = arith.constant 0 : index
      %c0_17 = arith.constant 0 : index
      %28 = vector.load %arg17[%c0_16, %c0_17] : memref<16x32xf32, #tpu.memory_space<vmem>>, vector<16x32xf32>
      tpu.vector_store %arg17[%c0_16, %c0_17], %27 {strides = array<i32>} : memref<16x32xf32, #tpu.memory_space<vmem>>, vector<16x32xf32>,
      %c0_18 = arith.constant 0 : index
      %c0_19 = arith.constant 0 : index
      %29 = vector.load %arg10[%c0_18, %c0_19] : memref<1x32xf32, #tpu.memory_space<vmem>>, vector<1x32xf32>
      %cst_20 = arith.constant dense<0.000000e+00> : vector<1x16xf32>
      %30 = tpu.matmul %29, %27, %cst_20 {dimension_numbers = #tpu.dot_dimension_numbers<[1], [1], [0], [0], [0, 0, 1, 0], [], []>} : vector<1x32xf32>, vector<16x32xf32>, vector<1x16xf32> -> vector<1x16xf32>
      %c0_21 = arith.constant 0 : index
      %c0_22 = arith.constant 0 : index
      %31 = vector.load %arg20[%c0_21, %c0_22] : memref<1x16xf32, #tpu.memory_space<vmem>>, vector<1x16xf32>
      tpu.vector_store %arg20[%c0_21, %c0_22], %30 {strides = array<i32>} : memref<1x16xf32, #tpu.memory_space<vmem>>, vector<1x16xf32>,
    } else {
    }
    %c0 = arith.constant 0 : index
    %c0_4 = arith.constant 0 : index
    %10 = vector.load %arg3[%c0, %c0_4] : memref<8x16xf32, #tpu.memory_space<vmem>>, vector<8x16xf32>
    %c8_i32 = arith.constant 8 : i32
    %11 = arith.muli %arg1, %c8_i32 : i32
    %12 = tpu.assume_multiple %11, 8 : i32
    %13 = arith.index_cast %12 : i32 to index
    %c0_5 = arith.constant 0 : index
    %14 = vector.load %arg17[%13, %c0_5] : memref<16x32xf32, #tpu.memory_space<vmem>>, vector<8x32xf32>
    %c0_6 = arith.constant 0 : index
    %c0_7 = arith.constant 0 : index
    %15 = vector.load %arg17[%c0_6, %c0_7] : memref<16x32xf32, #tpu.memory_space<vmem>>, vector<16x32xf32>
    %16 = arith.truncf %15 : vector<16x32xf32> to vector<16x32xbf16>
    %c0_i32_8 = arith.constant 0 : i32
    %17 = arith.cmpi eq, %arg0, %c0_i32_8 : i32
    %18 = arith.extui %17 : i1 to i32
    %c0_i32_9 = arith.constant 0 : i32
    %19 = arith.cmpi ne, %18, %c0_i32_9 : i32
    scf.if %19 {
      %c0_12 = arith.constant 0 : index
      %c0_13 = arith.constant 0 : index
      %23 = vector.load %arg7[%c0_12, %c0_13] : memref<32x4xf32, #tpu.memory_space<vmem>>, vector<32x4xf32>
      %cst = arith.constant dense<0.000000e+00> : vector<8x4xf32>
      %24 = tpu.matmul %14, %23, %cst {dimension_numbers = #tpu.dot_dimension_numbers<[1], [0], [0], [1], [0, 0, 1, 1], [], []>} : vector<8x32xf32>, vector<32x4xf32>, vector<8x4xf32> -> vector<8x4xf32>
      %25 = vector.shape_cast %24 : vector<8x4xf32> to vector<8x4x1xf32>
      %c0_14 = arith.constant 0 : index
      %c0_15 = arith.constant 0 : index
      %26 = vector.load %arg19[%c0_14, %c0_15] : memref<4x16xf32, #tpu.memory_space<vmem>>, vector<4x16xf32>
      %27 = vector.shape_cast %26 : vector<4x16xf32> to vector<1x4x16xf32>
      %28 = vector.broadcast %25 : vector<8x4x1xf32> to vector<8x4x16xf32>
      %29 = vector.broadcast %27 : vector<1x4x16xf32> to vector<8x4x16xf32>
      %30 = arith.addf %28, %29 : vector<8x4x16xf32>
      %cst_16 = arith.constant 0.000000e+00 : f32
      %31 = vector.broadcast %cst_16 : f32 to vector<8x4x16xf32>
      %32 = arith.cmpf ogt, %30, %31 : vector<8x4x16xf32>
      %cst_17 = arith.constant 2.000000e-01 : f32
      %33 = vector.broadcast %cst_17 : f32 to vector<8x4x16xf32>
      %34 = arith.mulf %33, %30 : vector<8x4x16xf32>
      %35 = arith.select %32, %30, %34 : vector<8x4x16xi1>, vector<8x4x16xf32>
      %36 = vector.shape_cast %10 : vector<8x16xf32> to vector<8x1x16xf32>
      %37 = vector.broadcast %36 : vector<8x1x16xf32> to vector<8x4x16xf32>
      %38 = arith.addf %35, %37 : vector<8x4x16xf32>
      %cst_18 = arith.constant dense<0xFF800000> : vector<8x4xf32>
      %39 = vector.multi_reduction <maximumf>, %38, %cst_18 [2] : vector<8x4x16xf32> to vector<8x4xf32>
      %40 = vector.shape_cast %39 : vector<8x4xf32> to vector<8x4x1xf32>
      %41 = vector.broadcast %40 : vector<8x4x1xf32> to vector<8x4x16xf32>
      %42 = arith.subf %38, %41 : vector<8x4x16xf32>
      %43 = math.exp %42 : vector<8x4x16xf32>
      %cst_19 = arith.constant dense<0.000000e+00> : vector<8x4xf32>
      %44 = vector.multi_reduction <add>, %43, %cst_19 [2] : vector<8x4x16xf32> to vector<8x4xf32>
      %45 = vector.shape_cast %44 : vector<8x4xf32> to vector<8x4x1xf32>
      %46 = tpu.reciprocal %45 {approx = true} : vector<8x4x1xf32> -> vector<8x4x1xf32>
      %47 = vector.broadcast %46 : vector<8x4x1xf32> to vector<8x4x16xf32>
      %48 = arith.mulf %43, %47 : vector<8x4x16xf32>
      %49 = vector.shape_cast %48 : vector<8x4x16xf32> to vector<32x16xf32>
      %50 = arith.truncf %49 : vector<32x16xf32> to vector<32x16xbf16>
      %cst_20 = arith.constant dense<0.000000e+00> : vector<32x32xf32>
      %51 = tpu.matmul %50, %16, %cst_20 {dimension_numbers = #tpu.dot_dimension_numbers<[1], [0], [0], [1], [0, 0, 1, 1], [], []>} : vector<32x16xbf16>, vector<16x32xbf16>, vector<32x32xf32> -> vector<32x32xf32>
      %52 = vector.shape_cast %51 : vector<32x32xf32> to vector<8x4x32xf32>
      %c0_21 = arith.constant 0 : index
      %c0_22 = arith.constant 0 : index
      %53 = vector.load %arg15[%c0_21, %c0_22] : memref<4x32xf32, #tpu.memory_space<vmem>>, vector<4x32xf32>
      %54 = vector.shape_cast %53 : vector<4x32xf32> to vector<1x4x32xf32>
      %55 = vector.broadcast %54 : vector<1x4x32xf32> to vector<8x4x32xf32>
      %56 = arith.mulf %52, %55 : vector<8x4x32xf32>
      %cst_23 = arith.constant dense<0.000000e+00> : vector<8x32xf32>
      %57 = vector.multi_reduction <add>, %56, %cst_23 [1] : vector<8x4x32xf32> to vector<8x32xf32>
      %c0_24 = arith.constant 0 : index
      %c0_25 = arith.constant 0 : index
      %58 = vector.load %arg8[%c0_24, %c0_25] : memref<1x32xf32, #tpu.memory_space<vmem>>, vector<1x32xf32>
      %59 = vector.broadcast %58 : vector<1x32xf32> to vector<8x32xf32>
      %60 = arith.addf %57, %59 : vector<8x32xf32>
      %cst_26 = arith.constant 0.000000e+00 : f32
      %61 = vector.broadcast %cst_26 : f32 to vector<8x32xf32>
      %62 = arith.maximumf %60, %61 : vector<8x32xf32>
      %63 = arith.index_cast %12 : i32 to index
      %c0_27 = arith.constant 0 : index
      %64 = vector.load %arg18[%63, %c0_27] : memref<16x32xf32, #tpu.memory_space<vmem>>, vector<8x32xf32>
      tpu.vector_store %arg18[%63, %c0_27], %62 {strides = array<i32>} : memref<16x32xf32, #tpu.memory_space<vmem>>, vector<8x32xf32>,
    } else {
    }
    %c1_i32_10 = arith.constant 1 : i32
    %20 = arith.cmpi eq, %arg0, %c1_i32_10 : i32
    %21 = arith.extui %20 : i1 to i32
    %c0_i32_11 = arith.constant 0 : i32
    %22 = arith.cmpi ne, %21, %c0_i32_11 : i32
    scf.if %22 {
      %c0_12 = arith.constant 0 : index
      %c0_13 = arith.constant 0 : index
      %23 = vector.load %arg11[%c0_12, %c0_13] : memref<32x1xf32, #tpu.memory_space<vmem>>, vector<32x1xf32>
      %cst = arith.constant dense<0.000000e+00> : vector<8x1xf32>
      %24 = tpu.matmul %14, %23, %cst {dimension_numbers = #tpu.dot_dimension_numbers<[1], [0], [0], [1], [0, 0, 1, 1], [], []>} : vector<8x32xf32>, vector<32x1xf32>, vector<8x1xf32> -> vector<8x1xf32>
      %c0_14 = arith.constant 0 : index
      %c0_15 = arith.constant 0 : index
      %25 = vector.load %arg20[%c0_14, %c0_15] : memref<1x16xf32, #tpu.memory_space<vmem>>, vector<1x16xf32>
      %26 = vector.broadcast %24 : vector<8x1xf32> to vector<8x16xf32>
      %27 = vector.broadcast %25 : vector<1x16xf32> to vector<8x16xf32>
      %28 = arith.addf %26, %27 : vector<8x16xf32>
      %cst_16 = arith.constant 0.000000e+00 : f32
      %29 = vector.broadcast %cst_16 : f32 to vector<8x16xf32>
      %30 = arith.cmpf ogt, %28, %29 : vector<8x16xf32>
      %cst_17 = arith.constant 2.000000e-01 : f32
      %31 = vector.broadcast %cst_17 : f32 to vector<8x16xf32>
      %32 = arith.mulf %31, %28 : vector<8x16xf32>
      %33 = arith.select %30, %28, %32 : vector<8x16xi1>, vector<8x16xf32>
      %34 = arith.addf %33, %10 : vector<8x16xf32>
      %cst_18 = arith.constant dense<0xFF800000> : vector<8xf32>
      %35 = vector.multi_reduction <maximumf>, %34, %cst_18 [1] : vector<8x16xf32> to vector<8xf32>
      %36 = vector.shape_cast %35 : vector<8xf32> to vector<8x1xf32>
      %37 = vector.broadcast %36 : vector<8x1xf32> to vector<8x16xf32>
      %38 = arith.subf %34, %37 : vector<8x16xf32>
      %39 = math.exp %38 : vector<8x16xf32>
      %cst_19 = arith.constant dense<0.000000e+00> : vector<8xf32>
      %40 = vector.multi_reduction <add>, %39, %cst_19 [1] : vector<8x16xf32> to vector<8xf32>
      %41 = vector.shape_cast %40 : vector<8xf32> to vector<8x1xf32>
      %42 = tpu.reciprocal %41 {approx = true} : vector<8x1xf32> -> vector<8x1xf32>
      %43 = vector.broadcast %42 : vector<8x1xf32> to vector<8x16xf32>
      %44 = arith.mulf %39, %43 : vector<8x16xf32>
      %45 = arith.truncf %44 : vector<8x16xf32> to vector<8x16xbf16>
      %cst_20 = arith.constant dense<0.000000e+00> : vector<8x32xf32>
      %46 = tpu.matmul %45, %16, %cst_20 {dimension_numbers = #tpu.dot_dimension_numbers<[1], [0], [0], [1], [0, 0, 1, 1], [], []>} : vector<8x16xbf16>, vector<16x32xbf16>, vector<8x32xf32> -> vector<8x32xf32>
      %c0_21 = arith.constant 0 : index
      %c0_22 = arith.constant 0 : index
      %47 = vector.load %arg12[%c0_21, %c0_22] : memref<1x32xf32, #tpu.memory_space<vmem>>, vector<1x32xf32>
      %48 = vector.broadcast %47 : vector<1x32xf32> to vector<8x32xf32>
      %49 = arith.addf %46, %48 : vector<8x32xf32>
      %cst_23 = arith.constant dense<0.000000e+00> : vector<8xf32>
      %50 = vector.multi_reduction <add>, %49, %cst_23 [1] : vector<8x32xf32> to vector<8xf32>
      %51 = vector.shape_cast %50 : vector<8xf32> to vector<8x1xf32>
      %cst_24 = arith.constant 3.200000e+01 : f32
      %52 = vector.broadcast %cst_24 : f32 to vector<8x1xf32>
      %53 = arith.divf %51, %52 : vector<8x1xf32>
      %54 = vector.broadcast %53 : vector<8x1xf32> to vector<8x32xf32>
      %55 = arith.subf %49, %54 : vector<8x32xf32>
      %56 = vector.broadcast %53 : vector<8x1xf32> to vector<8x32xf32>
      %57 = arith.subf %49, %56 : vector<8x32xf32>
      %58 = arith.mulf %55, %57 : vector<8x32xf32>
      %cst_25 = arith.constant dense<0.000000e+00> : vector<8xf32>
      %59 = vector.multi_reduction <add>, %58, %cst_25 [1] : vector<8x32xf32> to vector<8xf32>
      %60 = vector.shape_cast %59 : vector<8xf32> to vector<8x1xf32>
      %cst_26 = arith.constant 3.200000e+01 : f32
      %61 = vector.broadcast %cst_26 : f32 to vector<8x1xf32>
      %62 = arith.divf %60, %61 : vector<8x1xf32>
      %63 = vector.broadcast %53 : vector<8x1xf32> to vector<8x32xf32>
      %64 = arith.subf %49, %63 : vector<8x32xf32>
      %cst_27 = arith.constant 9.99999974E-6 : f32
      %65 = vector.broadcast %cst_27 : f32 to vector<8x1xf32>
      %66 = arith.addf %62, %65 : vector<8x1xf32>
      %67 = math.rsqrt %66 : vector<8x1xf32>
      %68 = vector.broadcast %67 : vector<8x1xf32> to vector<8x32xf32>
      %69 = arith.mulf %64, %68 : vector<8x32xf32>
      %c0_28 = arith.constant 0 : index
      %c0_29 = arith.constant 0 : index
      %70 = vector.load %arg13[%c0_28, %c0_29] : memref<1x32xf32, #tpu.memory_space<vmem>>, vector<1x32xf32>
      %71 = vector.broadcast %70 : vector<1x32xf32> to vector<8x32xf32>
      %72 = arith.mulf %69, %71 : vector<8x32xf32>
      %c0_30 = arith.constant 0 : index
      %c0_31 = arith.constant 0 : index
      %73 = vector.load %arg14[%c0_30, %c0_31] : memref<1x32xf32, #tpu.memory_space<vmem>>, vector<1x32xf32>
      %74 = vector.broadcast %73 : vector<1x32xf32> to vector<8x32xf32>
      %75 = arith.addf %72, %74 : vector<8x32xf32>
      %c0_32 = arith.constant 0 : index
      %c0_33 = arith.constant 0 : index
      %76 = vector.load %arg16[%c0_32, %c0_33] : memref<2x32xf32, #tpu.memory_space<vmem>>, vector<2x32xf32>
      %c0_34 = arith.constant 0 : index
      %c0_35 = arith.constant 0 : index
      %77 = vector.load %arg4[%c0_34, %c0_35] : memref<8x2xf32, #tpu.memory_space<vmem>>, vector<8x2xf32>
      %78 = arith.truncf %77 : vector<8x2xf32> to vector<8x2xbf16>
      %79 = arith.truncf %75 : vector<8x32xf32> to vector<8x32xbf16>
      %cst_36 = arith.constant dense<0.000000e+00> : vector<2x32xf32>
      %80 = tpu.matmul %78, %79, %cst_36 {dimension_numbers = #tpu.dot_dimension_numbers<[0], [0], [1], [1], [0, 1, 1, 1], [], []>} : vector<8x2xbf16>, vector<8x32xbf16>, vector<2x32xf32> -> vector<2x32xf32>
      %81 = arith.addf %76, %80 : vector<2x32xf32>
      %c0_37 = arith.constant 0 : index
      %c0_38 = arith.constant 0 : index
      %82 = vector.load %arg16[%c0_37, %c0_38] : memref<2x32xf32, #tpu.memory_space<vmem>>, vector<2x32xf32>
      tpu.vector_store %arg16[%c0_37, %c0_38], %81 {strides = array<i32>} : memref<2x32xf32, #tpu.memory_space<vmem>>, vector<2x32xf32>,
    } else {
    }
    return
  }
  func.func @transform_0(%arg0: i32, %arg1: i32) -> (i32, i32) {
    %c0_i32 = arith.constant 0 : i32
    %c0_i32_0 = arith.constant 0 : i32
    %c0_i32_1 = arith.constant 0 : i32
    return %c0_i32, %c0_i32_0 : i32, i32
  }
  func.func @transform_1(%arg0: i32, %arg1: i32) -> (i32, i32) {
    %c0_i32 = arith.constant 0 : i32
    %c0_i32_0 = arith.constant 0 : i32
    return %arg1, %c0_i32 : i32, i32
  }
  func.func @transform_2(%arg0: i32, %arg1: i32) -> (i32, i32) {
    %c0_i32 = arith.constant 0 : i32
    %c0_i32_0 = arith.constant 0 : i32
    return %arg1, %c0_i32 : i32, i32
  }
  func.func @transform_3(%arg0: i32, %arg1: i32) -> (i32, i32) {
    %c0_i32 = arith.constant 0 : i32
    %c0_i32_0 = arith.constant 0 : i32
    %c0_i32_1 = arith.constant 0 : i32
    return %c0_i32, %c0_i32_0 : i32, i32
  }
  func.func @transform_4(%arg0: i32, %arg1: i32) -> (i32, i32) {
    %c0_i32 = arith.constant 0 : i32
    %c0_i32_0 = arith.constant 0 : i32
    %c0_i32_1 = arith.constant 0 : i32
    return %c0_i32, %c0_i32_0 : i32, i32
  }
  func.func @transform_5(%arg0: i32, %arg1: i32) -> (i32, i32) {
    %c0_i32 = arith.constant 0 : i32
    %c0_i32_0 = arith.constant 0 : i32
    %c0_i32_1 = arith.constant 0 : i32
    return %c0_i32, %c0_i32_0 : i32, i32
  }
  func.func @transform_6(%arg0: i32, %arg1: i32) -> (i32, i32) {
    %c0_i32 = arith.constant 0 : i32
    %c0_i32_0 = arith.constant 0 : i32
    %c0_i32_1 = arith.constant 0 : i32
    return %c0_i32, %c0_i32_0 : i32, i32
  }
  func.func @transform_7(%arg0: i32, %arg1: i32) -> (i32, i32) {
    %c0_i32 = arith.constant 0 : i32
    %c0_i32_0 = arith.constant 0 : i32
    %c0_i32_1 = arith.constant 0 : i32
    return %c0_i32, %c0_i32_0 : i32, i32
  }
  func.func @transform_8(%arg0: i32, %arg1: i32) -> (i32, i32) {
    %c0_i32 = arith.constant 0 : i32
    %c0_i32_0 = arith.constant 0 : i32
    %c0_i32_1 = arith.constant 0 : i32
    return %c0_i32, %c0_i32_0 : i32, i32
  }
  func.func @transform_9(%arg0: i32, %arg1: i32) -> (i32, i32) {
    %c0_i32 = arith.constant 0 : i32
    %c0_i32_0 = arith.constant 0 : i32
    %c0_i32_1 = arith.constant 0 : i32
    return %c0_i32, %c0_i32_0 : i32, i32
  }
  func.func @transform_10(%arg0: i32, %arg1: i32) -> (i32, i32) {
    %c0_i32 = arith.constant 0 : i32
    %c0_i32_0 = arith.constant 0 : i32
    %c0_i32_1 = arith.constant 0 : i32
    return %c0_i32, %c0_i32_0 : i32, i32
  }
  func.func @transform_11(%arg0: i32, %arg1: i32) -> (i32, i32) {
    %c0_i32 = arith.constant 0 : i32
    %c0_i32_0 = arith.constant 0 : i32
    %c0_i32_1 = arith.constant 0 : i32
    return %c0_i32, %c0_i32_0 : i32, i32
  }
  func.func @transform_12(%arg0: i32, %arg1: i32) -> (i32, i32) {
    %c0_i32 = arith.constant 0 : i32
    %c0_i32_0 = arith.constant 0 : i32
    %c0_i32_1 = arith.constant 0 : i32
    return %c0_i32, %c0_i32_0 : i32, i32
  }
  func.func @transform_13(%arg0: i32, %arg1: i32) -> (i32, i32) {
    %c0_i32 = arith.constant 0 : i32
    %c0_i32_0 = arith.constant 0 : i32
    %c0_i32_1 = arith.constant 0 : i32
    return %c0_i32, %c0_i32_0 : i32, i32
  }
  func.func @transform_14(%arg0: i32, %arg1: i32) -> (i32, i32) {
    %c0_i32 = arith.constant 0 : i32
    %c0_i32_0 = arith.constant 0 : i32
    %c0_i32_1 = arith.constant 0 : i32
    return %c0_i32, %c0_i32_0 : i32, i32
  }
}

</mosaic_0001>

<llo_original>
// kernel: visit_graph_transformer.1
$region0: #{visit_graph_transformer.1}
  #allocation0 [shape = 'u32[]', space=smem, size = 0x4, offset = 0x4, fixed_abs, tag = 'smem constant byte address 0x4 - core index']
  #allocation1 [shape = 'u32[144,128]{1,0:T(1,128)}', space=vmem, size = 0x12000, scoped, tag = 'internal scratch']
  #allocation2 [shape = 'f32[16,32]{1,0:T(8,128)}', space=vmem, size = 0x2000, scoped, tag = 'scratch operand']
  #allocation3 [shape = 'f32[16,32]{1,0:T(8,128)}', space=vmem, size = 0x2000, scoped, tag = 'scratch operand']
  #allocation4 [shape = 'f32[4,16]{1,0:T(4,128)}', space=vmem, size = 0x800, scoped, tag = 'scratch operand']
  #allocation5 [shape = 'f32[1,16]{1,0:T(1,128)}', space=vmem, size = 0x200, scoped, tag = 'scratch operand']
  %s0 = inlined_call_operand.vmem [shape: f32[16,32], index: 0, kind: input, shape index: {}]
  %s1 = inlined_call_operand.vmem [shape: f32[16,16], index: 1, kind: input, shape index: {}]
  %s2 = inlined_call_operand.vmem [shape: f32[16,2], index: 2, kind: input, shape index: {}]
  %s3 = inlined_call_operand.vmem [shape: f32[32,32], index: 3, kind: input, shape index: {}]
  %s4 = inlined_call_operand.vmem [shape: f32[4,32], index: 4, kind: input, shape index: {}]
  %s5 = inlined_call_operand.vmem [shape: f32[32,4], index: 5, kind: input, shape index: {}]
  %s6 = inlined_call_operand.vmem [shape: f32[1,32], index: 6, kind: input, shape index: {}]
  %s7 = inlined_call_operand.vmem [shape: f32[32,32], index: 7, kind: input, shape index: {}]
  %s8 = inlined_call_operand.vmem [shape: f32[1,32], index: 8, kind: input, shape index: {}]
  %s9 = inlined_call_operand.vmem [shape: f32[32,1], index: 9, kind: input, shape index: {}]
  %s10 = inlined_call_operand.vmem [shape: f32[1,32], index: 10, kind: input, shape index: {}]
  %s11 = inlined_call_operand.vmem [shape: f32[1,32], index: 11, kind: input, shape index: {}]
  %s12 = inlined_call_operand.vmem [shape: f32[1,32], index: 12, kind: input, shape index: {}]
  %s13 = inlined_call_operand.vmem [shape: f32[4,32], index: 13, kind: input, shape index: {}]
  %s14 = inlined_call_operand.hbm [shape: f32[2,32], index: 14, kind: output, shape index: {}]
  %s15 = sld [smem:[#allocation0]]
  $region105: #{visit_graph_transformer.1} parent=0
    _
  %s17 = ssub.s32 1, %s15
  %s18 = scalar_select 0, %s17, %s15
  $region1: #{visit_graph_transformer.1} parent=0
    #allocation6 [shape = 'u8[1024]{0}', space=vmem, size = 0x400, scoped, tag = 'output window, operand 0, single buffered']
    #allocation7 [shape = 's32[2]{0}', space=sflag, size = 0x8, scoped, tag = 'scoped memory for visit_graph_transformer.1']
    %19 = vsyncpa [#allocation7], 0
    loop: start=0, step=1, limit=6
    $region2: #{visit_graph_transformer.1} parent=1 // loop_pre_header
      _
    $region3: #{visit_graph_transformer.1} parent=1 // loop_header
      %s21 = sphi 0, %s25
      %p22 = scmp.ge.s32.totalorder %s21, 6
      %s28 = sphi 0, %s40
      %s29 = sphi 0, %s36
      %s30 = sphi 0, %s28
      %s31 = sphi 0, %s29
      %s32 = sphi 0, %s30
      %s33 = sphi 0, %s31
      %s41 = sphi 0, %s41
      %s43 = sphi 0, %s41
      %s44 = sphi 0, %s43
      %s58 = sphi 0, %s44
      %s64 = sphi 0, %s66
      %s67 = sphi 0, %s64
      %s68 = sphi 0, %s67
      %s84 = sphi 0, %s68
      %s90 = sphi 0, %s92
      %s93 = sphi 0, %s90
      %s94 = sphi 0, %s93
      %s110 = sphi 0, %s94
      %s114 = sphi 0, %s114
      %s116 = sphi 0, %s114
      %s117 = sphi 0, %s116
      %s131 = sphi 0, %s117
      %s135 = sphi 0, %s135
      %s137 = sphi 0, %s135
      %s138 = sphi 0, %s137
      %s152 = sphi 0, %s138
      %s156 = sphi 0, %s156
      %s158 = sphi 0, %s156
      %s159 = sphi 0, %s158
      %s173 = sphi 0, %s159
      %s177 = sphi 0, %s177
      %s179 = sphi 0, %s177
      %s180 = sphi 0, %s179
      %s194 = sphi 0, %s180
      %s198 = sphi 0, %s198
      %s200 = sphi 0, %s198
      %s201 = sphi 0, %s200
      %s215 = sphi 0, %s201
      %s219 = sphi 0, %s219
      %s221 = sphi 0, %s219
      %s222 = sphi 0, %s221
      %s236 = sphi 0, %s222
      %s240 = sphi 0, %s240
      %s242 = sphi 0, %s240
      %s243 = sphi 0, %s242
      %s257 = sphi 0, %s243
      %s261 = sphi 0, %s261
      %s263 = sphi 0, %s261
      %s264 = sphi 0, %s263
      %s278 = sphi 0, %s264
      %s282 = sphi 0, %s282
      %s284 = sphi 0, %s282
      %s285 = sphi 0, %s284
      %s299 = sphi 0, %s285
      %s303 = sphi 0, %s303
      %s305 = sphi 0, %s303
      %s306 = sphi 0, %s305
      %s320 = sphi 0, %s306
      %s324 = sphi 0, %s324
      %s326 = sphi 0, %s324
      %s327 = sphi 0, %s326
      %s341 = sphi 0, %s327
      %s345 = sphi 0, %s345
      %s347 = sphi 0, %s345
      %s348 = sphi 0, %s347
      %s362 = sphi 0, %s348
    $region4: #{visit_graph_transformer.1} parent=1 // loop_header_branch
      %24 = sbr.rel (%p22) target = $region8
    $region5: #{visit_graph_transformer.1} parent=1 // loop_body
      %s26 = ssub.s32 %s21, 1
      %s27 = ssub.s32 %s21, 2
      %s34 = sadd.s32 1, %s29
      %p35 = scmp.ge.s32.totalorder %s34, 2
      %s36 = scalar_select %p35, 0, %s34
      %s37 = sadd.s32 1, %s28
      %s38 = scalar_select %p35, %s37, %s28
      %p39 = scmp.ge.s32.totalorder %s38, 2
      %s40 = scalar_select %p39, 0, %s38
      %s42 = sadd.s32 %s41, 1
      %p45 = scmp.eq.s32.totalorder %s21, 3
      %p46 = scmp.ne.s32.totalorder %s41, %s43
      %p47 = scmp.eq.s32.totalorder %s21, 0
      %p48 = por %p46, %p47
      %p49 = scmp.ne.s32.totalorder %s41, %s43
      %p50 = scmp.eq.s32.totalorder %s26, 3
      %p51 = por %p49, %p50
      %p52 = scmp.ne.s32.totalorder %s43, %s44
      %p53 = scmp.eq.s32.totalorder %s26, 0
      %p54 = por %p52, %p53
      %p55 = scmp.ne.s32.totalorder %s43, %s44
      %p56 = scmp.eq.s32.totalorder %s27, 3
      %p57 = por %p55, %p56
      %p59 = scmp.ne.s32.totalorder %s44, %s58
      %p60 = scmp.eq.s32.totalorder %s27, 0
      %p61 = por %p59, %p60
      %s62 = ssub.s32 %s29, %s36
      %p63 = scmp.eq.s32.totalorder %s62, 0
      %s65 = sadd.s32 %s64, 1
      %s66 = scalar_select %p63, %s64, %s65
      %p69 = pneg %p63
      %p70 = scmp.eq.s32.totalorder %s21, 3
      %p71 = por %p69, %p70
      %p72 = scmp.ne.s32.totalorder %s64, %s67
      %p73 = scmp.eq.s32.totalorder %s21, 0
      %p74 = por %p72, %p73
      %p75 = scmp.ne.s32.totalorder %s64, %s67
      %p76 = scmp.eq.s32.totalorder %s26, 3
      %p77 = por %p75, %p76
      %p78 = scmp.ne.s32.totalorder %s67, %s68
      %p79 = scmp.eq.s32.totalorder %s26, 0
      %p80 = por %p78, %p79
      %p81 = scmp.ne.s32.totalorder %s67, %s68
      %p82 = scmp.eq.s32.totalorder %s27, 3
      %p83 = por %p81, %p82
      %p85 = scmp.ne.s32.totalorder %s68, %s84
      %p86 = scmp.eq.s32.totalorder %s27, 0
      %p87 = por %p85, %p86
      %s88 = ssub.s32 %s29, %s36
      %p89 = scmp.eq.s32.totalorder %s88, 0
      %s91 = sadd.s32 %s90, 1
      %s92 = scalar_select %p89, %s90, %s91
      %p95 = pneg %p89
      %p96 = scmp.eq.s32.totalorder %s21, 3
      %p97 = por %p95, %p96
      %p98 = scmp.ne.s32.totalorder %s90, %s93
      %p99 = scmp.eq.s32.totalorder %s21, 0
      %p100 = por %p98, %p99
      %p101 = scmp.ne.s32.totalorder %s90, %s93
      %p102 = scmp.eq.s32.totalorder %s26, 3
      %p103 = por %p101, %p102
      %p104 = scmp.ne.s32.totalorder %s93, %s94
      %p105 = scmp.eq.s32.totalorder %s26, 0
      %p106 = por %p104, %p105
      %p107 = scmp.ne.s32.totalorder %s93, %s94
      %p108 = scmp.eq.s32.totalorder %s27, 3
      %p109 = por %p107, %p108
      %p111 = scmp.ne.s32.totalorder %s94, %s110
      %p112 = scmp.eq.s32.totalorder %s27, 0
      %p113 = por %p111, %p112
      %s115 = sadd.s32 %s114, 1
      %p118 = scmp.eq.s32.totalorder %s21, 3
      %p119 = scmp.ne.s32.totalorder %s114, %s116
      %p120 = scmp.eq.s32.totalorder %s21, 0
      %p121 = por %p119, %p120
      %p122 = scmp.ne.s32.totalorder %s114, %s116
      %p123 = scmp.eq.s32.totalorder %s26, 3
      %p124 = por %p122, %p123
      %p125 = scmp.ne.s32.totalorder %s116, %s117
      %p126 = scmp.eq.s32.totalorder %s26, 0
      %p127 = por %p125, %p126
      %p128 = scmp.ne.s32.totalorder %s116, %s117
      %p129 = scmp.eq.s32.totalorder %s27, 3
      %p130 = por %p128, %p129
      %p132 = scmp.ne.s32.totalorder %s117, %s131
      %p133 = scmp.eq.s32.totalorder %s27, 0
      %p134 = por %p132, %p133
      %s136 = sadd.s32 %s135, 1
      %p139 = scmp.eq.s32.totalorder %s21, 3
      %p140 = scmp.ne.s32.totalorder %s135, %s137
      %p141 = scmp.eq.s32.totalorder %s21, 0
      %p142 = por %p140, %p141
      %p143 = scmp.ne.s32.totalorder %s135, %s137
      %p144 = scmp.eq.s32.totalorder %s26, 3
      %p145 = por %p143, %p144
      %p146 = scmp.ne.s32.totalorder %s137, %s138
      %p147 = scmp.eq.s32.totalorder %s26, 0
      %p148 = por %p146, %p147
      %p149 = scmp.ne.s32.totalorder %s137, %s138
      %p150 = scmp.eq.s32.totalorder %s27, 3
      %p151 = por %p149, %p150
      %p153 = scmp.ne.s32.totalorder %s138, %s152
      %p154 = scmp.eq.s32.totalorder %s27, 0
      %p155 = por %p153, %p154
      %s157 = sadd.s32 %s156, 1
      %p160 = scmp.eq.s32.totalorder %s21, 3
      %p161 = scmp.ne.s32.totalorder %s156, %s158
      %p162 = scmp.eq.s32.totalorder %s21, 0
      %p163 = por %p161, %p162
      %p164 = scmp.ne.s32.totalorder %s156, %s158
      %p165 = scmp.eq.s32.totalorder %s26, 3
      %p166 = por %p164, %p165
      %p167 = scmp.ne.s32.totalorder %s158, %s159
      %p168 = scmp.eq.s32.totalorder %s26, 0
      %p169 = por %p167, %p168
      %p170 = scmp.ne.s32.totalorder %s158, %s159
      %p171 = scmp.eq.s32.totalorder %s27, 3
      %p172 = por %p170, %p171
      %p174 = scmp.ne.s32.totalorder %s159, %s173
      %p175 = scmp.eq.s32.totalorder %s27, 0
      %p176 = por %p174, %p175
      %s178 = sadd.s32 %s177, 1
      %p181 = scmp.eq.s32.totalorder %s21, 3
      %p182 = scmp.ne.s32.totalorder %s177, %s179
      %p183 = scmp.eq.s32.totalorder %s21, 0
      %p184 = por %p182, %p183
      %p185 = scmp.ne.s32.totalorder %s177, %s179
      %p186 = scmp.eq.s32.totalorder %s26, 3
      %p187 = por %p185, %p186
      %p188 = scmp.ne.s32.totalorder %s179, %s180
      %p189 = scmp.eq.s32.totalorder %s26, 0
      %p190 = por %p188, %p189
      %p191 = scmp.ne.s32.totalorder %s179, %s180
      %p192 = scmp.eq.s32.totalorder %s27, 3
      %p193 = por %p191, %p192
      %p195 = scmp.ne.s32.totalorder %s180, %s194
      %p196 = scmp.eq.s32.totalorder %s27, 0
      %p197 = por %p195, %p196
      %s199 = sadd.s32 %s198, 1
      %p202 = scmp.eq.s32.totalorder %s21, 3
      %p203 = scmp.ne.s32.totalorder %s198, %s200
      %p204 = scmp.eq.s32.totalorder %s21, 0
      %p205 = por %p203, %p204
      %p206 = scmp.ne.s32.totalorder %s198, %s200
      %p207 = scmp.eq.s32.totalorder %s26, 3
      %p208 = por %p206, %p207
      %p209 = scmp.ne.s32.totalorder %s200, %s201
      %p210 = scmp.eq.s32.totalorder %s26, 0
      %p211 = por %p209, %p210
      %p212 = scmp.ne.s32.totalorder %s200, %s201
      %p213 = scmp.eq.s32.totalorder %s27, 3
      %p214 = por %p212, %p213
      %p216 = scmp.ne.s32.totalorder %s201, %s215
      %p217 = scmp.eq.s32.totalorder %s27, 0
      %p218 = por %p216, %p217
      %s220 = sadd.s32 %s219, 1
      %p223 = scmp.eq.s32.totalorder %s21, 3
      %p224 = scmp.ne.s32.totalorder %s219, %s221
      %p225 = scmp.eq.s32.totalorder %s21, 0
      %p226 = por %p224, %p225
      %p227 = scmp.ne.s32.totalorder %s219, %s221
      %p228 = scmp.eq.s32.totalorder %s26, 3
      %p229 = por %p227, %p228
      %p230 = scmp.ne.s32.totalorder %s221, %s222
      %p231 = scmp.eq.s32.totalorder %s26, 0
      %p232 = por %p230, %p231
      %p233 = scmp.ne.s32.totalorder %s221, %s222
      %p234 = scmp.eq.s32.totalorder %s27, 3
      %p235 = por %p233, %p234
      %p237 = scmp.ne.s32.totalorder %s222, %s236
      %p238 = scmp.eq.s32.totalorder %s27, 0
      %p239 = por %p237, %p238
      %s241 = sadd.s32 %s240, 1
      %p244 = scmp.eq.s32.totalorder %s21, 3
      %p245 = scmp.ne.s32.totalorder %s240, %s242
      %p246 = scmp.eq.s32.totalorder %s21, 0
      %p247 = por %p245, %p246
      %p248 = scmp.ne.s32.totalorder %s240, %s242
      %p249 = scmp.eq.s32.totalorder %s26, 3
      %p250 = por %p248, %p249
      %p251 = scmp.ne.s32.totalorder %s242, %s243
      %p252 = scmp.eq.s32.totalorder %s26, 0
      %p253 = por %p251, %p252
      %p254 = scmp.ne.s32.totalorder %s242, %s243
      %p255 = scmp.eq.s32.totalorder %s27, 3
      %p256 = por %p254, %p255
      %p258 = scmp.ne.s32.totalorder %s243, %s257
      %p259 = scmp.eq.s32.totalorder %s27, 0
      %p260 = por %p258, %p259
      %s262 = sadd.s32 %s261, 1
      %p265 = scmp.eq.s32.totalorder %s21, 3
      %p266 = scmp.ne.s32.totalorder %s261, %s263
      %p267 = scmp.eq.s32.totalorder %s21, 0
      %p268 = por %p266, %p267
      %p269 = scmp.ne.s32.totalorder %s261, %s263
      %p270 = scmp.eq.s32.totalorder %s26, 3
      %p271 = por %p269, %p270
      %p272 = scmp.ne.s32.totalorder %s263, %s264
      %p273 = scmp.eq.s32.totalorder %s26, 0
      %p274 = por %p272, %p273
      %p275 = scmp.ne.s32.totalorder %s263, %s264
      %p276 = scmp.eq.s32.totalorder %s27, 3
      %p277 = por %p275, %p276
      %p279 = scmp.ne.s32.totalorder %s264, %s278
      %p280 = scmp.eq.s32.totalorder %s27, 0
      %p281 = por %p279, %p280
      %s283 = sadd.s32 %s282, 1
      %p286 = scmp.eq.s32.totalorder %s21, 3
      %p287 = scmp.ne.s32.totalorder %s282, %s284
      %p288 = scmp.eq.s32.totalorder %s21, 0
      %p289 = por %p287, %p288
      %p290 = scmp.ne.s32.totalorder %s282, %s284
      %p291 = scmp.eq.s32.totalorder %s26, 3
      %p292 = por %p290, %p291
      %p293 = scmp.ne.s32.totalorder %s284, %s285
      %p294 = scmp.eq.s32.totalorder %s26, 0
      %p295 = por %p293, %p294
      %p296 = scmp.ne.s32.totalorder %s284, %s285
      %p297 = scmp.eq.s32.totalorder %s27, 3
      %p298 = por %p296, %p297
      %p300 = scmp.ne.s32.totalorder %s285, %s299
      %p301 = scmp.eq.s32.totalorder %s27, 0
      %p302 = por %p300, %p301
      %s304 = sadd.s32 %s303, 1
      %p307 = scmp.eq.s32.totalorder %s21, 3
      %p308 = scmp.ne.s32.totalorder %s303, %s305
      %p309 = scmp.eq.s32.totalorder %s21, 0
      %p310 = por %p308, %p309
      %p311 = scmp.ne.s32.totalorder %s303, %s305
      %p312 = scmp.eq.s32.totalorder %s26, 3
      %p313 = por %p311, %p312
      %p314 = scmp.ne.s32.totalorder %s305, %s306
      %p315 = scmp.eq.s32.totalorder %s26, 0
      %p316 = por %p314, %p315
      %p317 = scmp.ne.s32.totalorder %s305, %s306
      %p318 = scmp.eq.s32.totalorder %s27, 3
      %p319 = por %p317, %p318
      %p321 = scmp.ne.s32.totalorder %s306, %s320
      %p322 = scmp.eq.s32.totalorder %s27, 0
      %p323 = por %p321, %p322
      %s325 = sadd.s32 %s324, 1
      %p328 = scmp.eq.s32.totalorder %s21, 3
      %p329 = scmp.ne.s32.totalorder %s324, %s326
      %p330 = scmp.eq.s32.totalorder %s21, 0
      %p331 = por %p329, %p330
      %p332 = scmp.ne.s32.totalorder %s324, %s326
      %p333 = scmp.eq.s32.totalorder %s26, 3
      %p334 = por %p332, %p333
      %p335 = scmp.ne.s32.totalorder %s326, %s327
      %p336 = scmp.eq.s32.totalorder %s26, 0
      %p337 = por %p335, %p336
      %p338 = scmp.ne.s32.totalorder %s326, %s327
      %p339 = scmp.eq.s32.totalorder %s27, 3
      %p340 = por %p338, %p339
      %p342 = scmp.ne.s32.totalorder %s327, %s341
      %p343 = scmp.eq.s32.totalorder %s27, 0
      %p344 = por %p342, %p343
      %s346 = sadd.s32 %s345, 1
      %p349 = scmp.eq.s32.totalorder %s21, 3
      %p350 = scmp.ne.s32.totalorder %s345, %s347
      %p351 = scmp.eq.s32.totalorder %s21, 0
      %p352 = por %p350, %p351
      %p353 = scmp.ne.s32.totalorder %s345, %s347
      %p354 = scmp.eq.s32.totalorder %s26, 3
      %p355 = por %p353, %p354
      %p356 = scmp.ne.s32.totalorder %s347, %s348
      %p357 = scmp.eq.s32.totalorder %s26, 0
      %p358 = por %p356, %p357
      %p359 = scmp.ne.s32.totalorder %s347, %s348
      %p360 = scmp.eq.s32.totalorder %s27, 3
      %p361 = por %p359, %p360
      %p363 = scmp.ne.s32.totalorder %s348, %s362
      %p364 = scmp.eq.s32.totalorder %s27, 0
      %p365 = por %p363, %p364
      %p366 = scmp.le.s32.totalorder 1, %s21
      %p367 = scmp.lt.s32.totalorder %s21, 5
      %p368 = pnand %p366, %p367
      %p369 = pneg %p368
      // Predicated region
      $region9: #{visit_graph_transformer.1} parent=5 // pred_check
        _
      $region10: #{visit_graph_transformer.1} parent=5 // pred_check_branch
        %371 = sbr.rel (%p368) target = $region12
      $region11: #{visit_graph_transformer.1} parent=5 // pred_region
        %s372 = ssub.s32 %s21, 1
        // Predicated region
        $region13: #{visit_graph_transformer.1} parent=11 // pred_check
          %p373 = pneg %p54
        $region14: #{visit_graph_transformer.1} parent=11 // pred_check_branch
          %375 = sbr.rel (%p373) target = $region16
        $region15: #{visit_graph_transformer.1} parent=11 // pred_region
          _
        $region16: #{visit_graph_transformer.1} parent=11 // pred_fallthru
          _
        // Predicated region
        $region17: #{visit_graph_transformer.1} parent=11 // pred_check
          %p376 = pneg %p127
        $region18: #{visit_graph_transformer.1} parent=11 // pred_check_branch
          %378 = sbr.rel (%p376) target = $region20
        $region19: #{visit_graph_transformer.1} parent=11 // pred_region
          _
        $region20: #{visit_graph_transformer.1} parent=11 // pred_fallthru
          _
        // Predicated region
        $region21: #{visit_graph_transformer.1} parent=11 // pred_check
          %p379 = pneg %p148
        $region22: #{visit_graph_transformer.1} parent=11 // pred_check_branch
          %381 = sbr.rel (%p379) target = $region24
        $region23: #{visit_graph_transformer.1} parent=11 // pred_region
          _
        $region24: #{visit_graph_transformer.1} parent=11 // pred_fallthru
          _
        // Predicated region
        $region25: #{visit_graph_transformer.1} parent=11 // pred_check
          %p382 = pneg %p169
        $region26: #{visit_graph_transformer.1} parent=11 // pred_check_branch
          %384 = sbr.rel (%p382) target = $region28
        $region27: #{visit_graph_transformer.1} parent=11 // pred_region
          _
        $region28: #{visit_graph_transformer.1} parent=11 // pred_fallthru
          _
        // Predicated region
        $region29: #{visit_graph_transformer.1} parent=11 // pred_check
          %p385 = pneg %p190
        $region30: #{visit_graph_transformer.1} parent=11 // pred_check_branch
          %387 = sbr.rel (%p385) target = $region32
        $region31: #{visit_graph_transformer.1} parent=11 // pred_region
          _
        $region32: #{visit_graph_transformer.1} parent=11 // pred_fallthru
          _
        // Predicated region
        $region33: #{visit_graph_transformer.1} parent=11 // pred_check
          %p388 = pneg %p211
        $region34: #{visit_graph_transformer.1} parent=11 // pred_check_branch
          %390 = sbr.rel (%p388) target = $region36
        $region35: #{visit_graph_transformer.1} parent=11 // pred_region
          _
        $region36: #{visit_graph_transformer.1} parent=11 // pred_fallthru
          _
        // Predicated region
        $region37: #{visit_graph_transformer.1} parent=11 // pred_check
          %p391 = pneg %p232
        $region38: #{visit_graph_transformer.1} parent=11 // pred_check_branch
          %393 = sbr.rel (%p391) target = $region40
        $region39: #{visit_graph_transformer.1} parent=11 // pred_region
          _
        $region40: #{visit_graph_transformer.1} parent=11 // pred_fallthru
          _
        // Predicated region
        $region41: #{visit_graph_transformer.1} parent=11 // pred_check
          %p394 = pneg %p253
        $region42: #{visit_graph_transformer.1} parent=11 // pred_check_branch
          %396 = sbr.rel (%p394) target = $region44
        $region43: #{visit_graph_transformer.1} parent=11 // pred_region
          _
        $region44: #{visit_graph_transformer.1} parent=11 // pred_fallthru
          _
        // Predicated region
        $region45: #{visit_graph_transformer.1} parent=11 // pred_check
          %p397 = pneg %p274
        $region46: #{visit_graph_transformer.1} parent=11 // pred_check_branch
          %399 = sbr.rel (%p397) target = $region48
        $region47: #{visit_graph_transformer.1} parent=11 // pred_region
          _
        $region48: #{visit_graph_transformer.1} parent=11 // pred_fallthru
          _
        // Predicated region
        $region49: #{visit_graph_transformer.1} parent=11 // pred_check
          %p400 = pneg %p295
        $region50: #{visit_graph_transformer.1} parent=11 // pred_check_branch
          %402 = sbr.rel (%p400) target = $region52
        $region51: #{visit_graph_transformer.1} parent=11 // pred_region
          _
        $region52: #{visit_graph_transformer.1} parent=11 // pred_fallthru
          _
        // Predicated region
        $region53: #{visit_graph_transformer.1} parent=11 // pred_check
          %p403 = pneg %p316
        $region54: #{visit_graph_transformer.1} parent=11 // pred_check_branch
          %405 = sbr.rel (%p403) target = $region56
        $region55: #{visit_graph_transformer.1} parent=11 // pred_region
          _
        $region56: #{visit_graph_transformer.1} parent=11 // pred_fallthru
          _
        // Predicated region
        $region57: #{visit_graph_transformer.1} parent=11 // pred_check
          %p406 = pneg %p337
        $region58: #{visit_graph_transformer.1} parent=11 // pred_check_branch
          %408 = sbr.rel (%p406) target = $region60
        $region59: #{visit_graph_transformer.1} parent=11 // pred_region
          _
        $region60: #{visit_graph_transformer.1} parent=11 // pred_fallthru
          _
      $region12: #{visit_graph_transformer.1} parent=5 // pred_fallthru
        _
      %p409 = scmp.lt.s32.totalorder %s21, 4
      // Predicated region
      $region61: #{visit_graph_transformer.1} parent=5 // pred_check
        %p410 = pneg %p409
      $region62: #{visit_graph_transformer.1} parent=5 // pred_check_branch
        %412 = sbr.rel (%p410) target = $region64
      $region63: #{visit_graph_transformer.1} parent=5 // pred_region
        // Predicated region
        $region65: #{visit_graph_transformer.1} parent=63 // pred_check
          %p413 = pneg %p74
        $region66: #{visit_graph_transformer.1} parent=63 // pred_check_branch
          %415 = sbr.rel (%p413) target = $region68
        $region67: #{visit_graph_transformer.1} parent=63 // pred_region
          %p416 = scmp.lt.s32.totalorder %s29, 1
          %s417 = scalar_select %p416, %s29, 1
          %s418 = smul.addr %s417, 8
          %s419 = scalar_lea.vmem %s1, %s418
        $region68: #{visit_graph_transformer.1} parent=63 // pred_fallthru
          _
        // Predicated region
        $region69: #{visit_graph_transformer.1} parent=63 // pred_check
          %p420 = pneg %p100
        $region70: #{visit_graph_transformer.1} parent=63 // pred_check_branch
          %422 = sbr.rel (%p420) target = $region72
        $region71: #{visit_graph_transformer.1} parent=63 // pred_region
          %p423 = scmp.lt.s32.totalorder %s29, 1
          %s424 = scalar_select %p423, %s29, 1
          %s425 = smul.addr %s424, 8
          %s426 = scalar_lea.vmem %s2, %s425
        $region72: #{visit_graph_transformer.1} parent=63 // pred_fallthru
          _
      $region64: #{visit_graph_transformer.1} parent=5 // pred_fallthru
        _
      %p427 = scmp.le.s32.totalorder 1, %s21
      %p428 = scmp.lt.s32.totalorder %s21, 5
      %p429 = pnand %p427, %p428
      %p430 = pneg %p429
      // Predicated region
      $region73: #{visit_graph_transformer.1} parent=5 // pred_check
        _
      $region74: #{visit_graph_transformer.1} parent=5 // pred_check_branch
        %432 = sbr.rel (%p429) target = $region76
      $region75: #{visit_graph_transformer.1} parent=5 // pred_region
        %s433 = ssub.s32 %s21, 1
        %p434 = pneg %p54
        %p435 = pneg %p51
        %p436 = scmp.lt.s32.totalorder %s31, 1
        %s437 = scalar_select %p436, %s31, 1
        %s438 = smul.addr %s437, 8
        %s439 = scalar_lea.vmem %s1, %s438
        %p440 = pneg %p80
        %p441 = pneg %p77
        %p442 = scmp.lt.s32.totalorder %s31, 1
        %s443 = scalar_select %p442, %s31, 1
        %s444 = smul.addr %s443, 8
        %s445 = scalar_lea.vmem %s2, %s444
        %p446 = pneg %p106
        %p447 = pneg %p103
        %p448 = pneg %p127
        %p449 = pneg %p124
        %p450 = pneg %p148
        %p451 = pneg %p145
        %p452 = pneg %p169
        %p453 = pneg %p166
        %p454 = pneg %p190
        %p455 = pneg %p187
        %p456 = pneg %p211
        %p457 = pneg %p208
        %p458 = pneg %p232
        %p459 = pneg %p229
        %p460 = pneg %p253
        %p461 = pneg %p250
        %p462 = pneg %p274
        %p463 = pneg %p271
        %p464 = pneg %p295
        %p465 = pneg %p292
        %p466 = pneg %p316
        %p467 = pneg %p313
        %p468 = pneg %p337
        %p469 = pneg %p334
        %p470 = pneg %p358
        %p471 = pneg %p355
        %p472 = scmp.lt.s32.totalorder %s31, 1
        %s473 = scalar_select %p472, %s31, 1
        %s474 = smul.addr %s473, 8
        %s475 = scalar_lea.vmem %s1, %s474
        %p476 = scmp.lt.s32.totalorder %s31, 1
        %s477 = scalar_select %p476, %s31, 1
        %s478 = smul.addr %s477, 8
        %s479 = scalar_lea.vmem %s2, %s478
        %p481 = scmp.eq.s32.totalorder %s30, 0
        %p482 = scmp.eq.s32.totalorder %s31, 0
        %p483 = pnand %p481, %p482
        %p484 = pneg %p483
        // Predicated region
        $region77: #{visit_graph_transformer.1} parent=75 // pred_check
          _
        $region78: #{visit_graph_transformer.1} parent=75 // pred_check_branch
          %486 = sbr.rel (%p483) target = $region80
        $region79: #{visit_graph_transformer.1} parent=75 // pred_region
          %vm487 = vcmask 254976
          %488 = vst.msk [vmem:[#allocation6] sm:$0x3] %vm487, 0.0
          %v489 = vld [vmem:[%s0] sm:$0xff]
          %v490 = vld [vmem:[%s0 + $0x8] sm:$0xff]
          %v491 = vpack.c.bf16 %v490, %v489
          %v492 = vld [vmem:[%s3] sm:$0xff]
          %v493 = vld [vmem:[%s3 + $0x8] sm:$0xff]
          %v494 = vld [vmem:[%s3 + $0x10] sm:$0xff]
          %v495 = vld [vmem:[%s3 + $0x18] sm:$0xff]
          %v496 = vpack.c.bf16 %v493, %v492
          %v497 = vpack.c.bf16 %v495, %v494
          %vm498 = vcmask 261120
          %v500 = vsel %vm498, %v491, 0
          %502 = vmatprep.subr.bf16.mxu0 0
          %503 = vmatpush1.bf16.msra.mxu0 0
          %504 = vmatprep.subr.bf16.mxu0 0
          %505 = vmatpush1.bf16.msra.mxu0 0
          %506 = vmatprep.subr.bf16.mxu0 0
          %507 = vmatpush1.bf16.msra.mxu0 0
          %508 = vmatprep.subr.bf16.mxu0 0
          %509 = vmatpush1.bf16.msra.mxu0 0
          %510 = vmatprep.subr.bf16.mxu0 0
          %511 = vmatpush1.bf16.msra.mxu0 0
          %512 = vmatprep.subr.bf16.mxu0 0
          %513 = vmatpush1.bf16.msra.mxu0 0
          %514 = vmatprep.subr.bf16.mxu0 0
          %515 = vmatpush1.bf16.msra.mxu0 %v497
          %516 = vmatprep.subr.bf16.mxu0 0
          %517 = vmatpush1.bf16.msra.mxu0 %v496
          %518 = vmatprep.subr.bf16.mxu0 0
          %519 = vmatpush2.bf16.msra.mxu0 0
          %520 = vmatprep.subr.bf16.mxu0 0
          %521 = vmatpush2.bf16.msra.mxu0 0
          %522 = vmatprep.subr.bf16.mxu0 0
          %523 = vmatpush2.bf16.msra.mxu0 0
          %524 = vmatprep.subr.bf16.mxu0 0
          %525 = vmatpush2.bf16.msra.mxu0 0
          %526 = vmatprep.subr.bf16.mxu0 0
          %527 = vmatpush2.bf16.msra.mxu0 0
          %528 = vmatprep.subr.bf16.mxu0 0
          %529 = vmatpush2.bf16.msra.mxu0 0
          %530 = vmatprep.subr.bf16.mxu0 0
          %531 = vmatpush2.bf16.msra.mxu0 0
          %532 = vmatprep.subr.bf16.mxu0 0
          %533 = vmatpush2.bf16.msra.mxu0 0
          %534 = vmatprep.mubr.bf16.mxu0 0
          %535 = vmatmul.mubr.bf16.gmra.mxu0 %v500
          %v536 = vpop.f32.mrf.mxu0
          %v537 = vadd.f32 0.0, %v536
          %v538 = vpop.f32.mrf.mxu0
          %v539 = vpop.f32.mrf.mxu0
          %v540 = vadd.f32 0.0, %v539
          %v541 = vpop.f32.mrf.mxu0
          %542 = vdwg.mxu0
          %543 = vst.msk [vmem:[#allocation2] sm:$0xff] %vm498, %v537
          %544 = vst.msk [vmem:[#allocation2 + $0x8] sm:$0xff] %vm498, %v540
          %v545 = vld [vmem:[%s4] sm:$0xf]
          %v547 = vsel %vm498, %v545, 0
          %v550 = vsel %vm498, %v537, 0
          %v553 = vsel %vm498, %v540, 0
          %555 = vmatprep.subr.mxu0 0.0
          %556 = vmatpush1.xpose.msra.mxu0 0.0
          %557 = vmatprep.subr.mxu0 0.0
          %558 = vmatpush1.xpose.msra.mxu0 0.0
          %559 = vmatprep.subr.mxu0 0.0
          %560 = vmatpush1.xpose.msra.mxu0 0.0
          %561 = vmatprep.subr.mxu0 0.0
          %562 = vmatpush1.xpose.msra.mxu0 0.0
          %563 = vmatprep.subr.mxu0 0.0
          %564 = vmatpush1.xpose.msra.mxu0 0.0
          %565 = vmatprep.subr.mxu0 0.0
          %566 = vmatpush1.xpose.msra.mxu0 0.0
          %567 = vmatprep.subr.mxu0 0.0
          %568 = vmatpush1.xpose.msra.mxu0 0.0
          %569 = vmatprep.subr.mxu0 0.0
          %570 = vmatpush1.xpose.msra.mxu0 0.0
          %571 = vmatprep.subr.mxu0 0.0
          %572 = vmatpush1.xpose.msra.mxu0 0.0
          %573 = vmatprep.subr.mxu0 0.0
          %574 = vmatpush1.xpose.msra.mxu0 0.0
          %575 = vmatprep.subr.mxu0 0.0
          %576 = vmatpush1.xpose.msra.mxu0 0.0
          %577 = vmatprep.subr.mxu0 0.0
          %578 = vmatpush1.xpose.msra.mxu0 0.0
          %579 = vmatprep.subr.mxu0 0.0
          %580 = vmatpush1.xpose.msra.mxu0 0.0
          %581 = vmatprep.subr.mxu0 0.0
          %582 = vmatpush1.xpose.msra.mxu0 0.0
          %583 = vmatprep.subr.mxu0 0.0
          %584 = vmatpush1.xpose.msra.mxu0 %v553
          %585 = vmatprep.subr.mxu0 0.0
          %586 = vmatpush1.xpose.msra.mxu0 %v550
          %587 = vmatprep.subr.mxu0 0.0
          %588 = vmatpush2.xpose.msra.mxu0 0.0
          %589 = vmatprep.subr.mxu0 0.0
          %590 = vmatpush2.xpose.msra.mxu0 0.0
          %591 = vmatprep.subr.mxu0 0.0
          %592 = vmatpush2.xpose.msra.mxu0 0.0
          %593 = vmatprep.subr.mxu0 0.0
          %594 = vmatpush2.xpose.msra.mxu0 0.0
          %595 = vmatprep.subr.mxu0 0.0
          %596 = vmatpush2.xpose.msra.mxu0 0.0
          %597 = vmatprep.subr.mxu0 0.0
          %598 = vmatpush2.xpose.msra.mxu0 0.0
          %599 = vmatprep.subr.mxu0 0.0
          %600 = vmatpush2.xpose.msra.mxu0 0.0
          %601 = vmatprep.subr.mxu0 0.0
          %602 = vmatpush2.xpose.msra.mxu0 0.0
          %603 = vmatprep.subr.mxu0 0.0
          %604 = vmatpush2.xpose.msra.mxu0 0.0
          %605 = vmatprep.subr.mxu0 0.0
          %606 = vmatpush2.xpose.msra.mxu0 0.0
          %607 = vmatprep.subr.mxu0 0.0
          %608 = vmatpush2.xpose.msra.mxu0 0.0
          %609 = vmatprep.subr.mxu0 0.0
          %610 = vmatpush2.xpose.msra.mxu0 0.0
          %611 = vmatprep.subr.mxu0 0.0
          %612 = vmatpush2.xpose.msra.mxu0 0.0
          %613 = vmatprep.subr.mxu0 0.0
          %614 = vmatpush2.xpose.msra.mxu0 0.0
          %615 = vmatprep.subr.mxu0 0.0
          %616 = vmatpush2.xpose.msra.mxu0 0.0
          %617 = vmatprep.subr.mxu0 0.0
          %618 = vmatpush2.xpose.msra.mxu0 0.0
          %619 = vmatprep.mubr.f32.mxu0 0.0
          %620 = vmatmul.mubr.f32.gmra.mxu0 %v547
          %v621 = vpop.f32.mrf.mxu0
          %v622 = vadd.f32 0.0, %v621
          %v623 = vpop.f32.mrf.mxu0
          %624 = vdwg.mxu0
          %vm625 = vcmask 125952
          %626 = vst.msk [vmem:[#allocation4] sm:$0xf] %vm625, %v622
        $region80: #{visit_graph_transformer.1} parent=75 // pred_fallthru
          _
        %p627 = scmp.eq.s32.totalorder %s30, 1
        %p628 = pnand %p627, %p482
        %p629 = pneg %p628
        // Predicated region
        $region81: #{visit_graph_transformer.1} parent=75 // pred_check
          _
        $region82: #{visit_graph_transformer.1} parent=75 // pred_check_branch
          %631 = sbr.rel (%p628) target = $region84
        $region83: #{visit_graph_transformer.1} parent=75 // pred_region
          %v632 = vld [vmem:[#allocation3] sm:$0xff]
          %v633 = vld [vmem:[#allocation3 + $0x8] sm:$0xff]
          %v634 = vpack.c.bf16 %v633, %v632
          %v635 = vld [vmem:[%s7] sm:$0xff]
          %v636 = vld [vmem:[%s7 + $0x8] sm:$0xff]
          %v637 = vld [vmem:[%s7 + $0x10] sm:$0xff]
          %v638 = vld [vmem:[%s7 + $0x18] sm:$0xff]
          %v639 = vpack.c.bf16 %v636, %v635
          %v640 = vpack.c.bf16 %v638, %v637
          %vm641 = vcmask 261120
          %v643 = vsel %vm641, %v634, 0
          %645 = vmatprep.subr.bf16.mxu0 0
          %646 = vmatpush1.bf16.msra.mxu0 0
          %647 = vmatprep.subr.bf16.mxu0 0
          %648 = vmatpush1.bf16.msra.mxu0 0
          %649 = vmatprep.subr.bf16.mxu0 0
          %650 = vmatpush1.bf16.msra.mxu0 0
          %651 = vmatprep.subr.bf16.mxu0 0
          %652 = vmatpush1.bf16.msra.mxu0 0
          %653 = vmatprep.subr.bf16.mxu0 0
          %654 = vmatpush1.bf16.msra.mxu0 0
          %655 = vmatprep.subr.bf16.mxu0 0
          %656 = vmatpush1.bf16.msra.mxu0 0
          %657 = vmatprep.subr.bf16.mxu0 0
          %658 = vmatpush1.bf16.msra.mxu0 %v640
          %659 = vmatprep.subr.bf16.mxu0 0
          %660 = vmatpush1.bf16.msra.mxu0 %v639
          %661 = vmatprep.subr.bf16.mxu0 0
          %662 = vmatpush2.bf16.msra.mxu0 0
          %663 = vmatprep.subr.bf16.mxu0 0
          %664 = vmatpush2.bf16.msra.mxu0 0
          %665 = vmatprep.subr.bf16.mxu0 0
          %666 = vmatpush2.bf16.msra.mxu0 0
          %667 = vmatprep.subr.bf16.mxu0 0
          %668 = vmatpush2.bf16.msra.mxu0 0
          %669 = vmatprep.subr.bf16.mxu0 0
          %670 = vmatpush2.bf16.msra.mxu0 0
          %671 = vmatprep.subr.bf16.mxu0 0
          %672 = vmatpush2.bf16.msra.mxu0 0
          %673 = vmatprep.subr.bf16.mxu0 0
          %674 = vmatpush2.bf16.msra.mxu0 0
          %675 = vmatprep.subr.bf16.mxu0 0
          %676 = vmatpush2.bf16.msra.mxu0 0
          %677 = vmatprep.mubr.bf16.mxu0 0
          %678 = vmatmul.mubr.bf16.gmra.mxu0 %v643
          %v679 = vpop.f32.mrf.mxu0
          %v680 = vadd.f32 0.0, %v679
          %v681 = vpop.f32.mrf.mxu0
          %v682 = vpop.f32.mrf.mxu0
          %v683 = vadd.f32 0.0, %v682
          %v684 = vpop.f32.mrf.mxu0
          %685 = vdwg.mxu0
          %686 = vst.msk [vmem:[#allocation2] sm:$0xff] %vm641, %v680
          %687 = vst.msk [vmem:[#allocation2 + $0x8] sm:$0xff] %vm641, %v683
          %v688 = vld [vmem:[%s8] sm:$0x1]
          %v690 = vsel %vm641, %v688, 0
          %v693 = vsel %vm641, %v680, 0
          %v696 = vsel %vm641, %v683, 0
          %698 = vmatprep.subr.mxu0 0.0
          %699 = vmatpush1.xpose.msra.mxu0 0.0
          %700 = vmatprep.subr.mxu0 0.0
          %701 = vmatpush1.xpose.msra.mxu0 0.0
          %702 = vmatprep.subr.mxu0 0.0
          %703 = vmatpush1.xpose.msra.mxu0 0.0
          %704 = vmatprep.subr.mxu0 0.0
          %705 = vmatpush1.xpose.msra.mxu0 0.0
          %706 = vmatprep.subr.mxu0 0.0
          %707 = vmatpush1.xpose.msra.mxu0 0.0
          %708 = vmatprep.subr.mxu0 0.0
          %709 = vmatpush1.xpose.msra.mxu0 0.0
          %710 = vmatprep.subr.mxu0 0.0
          %711 = vmatpush1.xpose.msra.mxu0 0.0
          %712 = vmatprep.subr.mxu0 0.0
          %713 = vmatpush1.xpose.msra.mxu0 0.0
          %714 = vmatprep.subr.mxu0 0.0
          %715 = vmatpush1.xpose.msra.mxu0 0.0
          %716 = vmatprep.subr.mxu0 0.0
          %717 = vmatpush1.xpose.msra.mxu0 0.0
          %718 = vmatprep.subr.mxu0 0.0
          %719 = vmatpush1.xpose.msra.mxu0 0.0
          %720 = vmatprep.subr.mxu0 0.0
          %721 = vmatpush1.xpose.msra.mxu0 0.0
          %722 = vmatprep.subr.mxu0 0.0
          %723 = vmatpush1.xpose.msra.mxu0 0.0
          %724 = vmatprep.subr.mxu0 0.0
          %725 = vmatpush1.xpose.msra.mxu0 0.0
          %726 = vmatprep.subr.mxu0 0.0
          %727 = vmatpush1.xpose.msra.mxu0 %v696
          %728 = vmatprep.subr.mxu0 0.0
          %729 = vmatpush1.xpose.msra.mxu0 %v693
          %730 = vmatprep.subr.mxu0 0.0
          %731 = vmatpush2.xpose.msra.mxu0 0.0
          %732 = vmatprep.subr.mxu0 0.0
          %733 = vmatpush2.xpose.msra.mxu0 0.0
          %734 = vmatprep.subr.mxu0 0.0
          %735 = vmatpush2.xpose.msra.mxu0 0.0
          %736 = vmatprep.subr.mxu0 0.0
          %737 = vmatpush2.xpose.msra.mxu0 0.0
          %738 = vmatprep.subr.mxu0 0.0
          %739 = vmatpush2.xpose.msra.mxu0 0.0
          %740 = vmatprep.subr.mxu0 0.0
          %741 = vmatpush2.xpose.msra.mxu0 0.0
          %742 = vmatprep.subr.mxu0 0.0
          %743 = vmatpush2.xpose.msra.mxu0 0.0
          %744 = vmatprep.subr.mxu0 0.0
          %745 = vmatpush2.xpose.msra.mxu0 0.0
          %746 = vmatprep.subr.mxu0 0.0
          %747 = vmatpush2.xpose.msra.mxu0 0.0
          %748 = vmatprep.subr.mxu0 0.0
          %749 = vmatpush2.xpose.msra.mxu0 0.0
          %750 = vmatprep.subr.mxu0 0.0
          %751 = vmatpush2.xpose.msra.mxu0 0.0
          %752 = vmatprep.subr.mxu0 0.0
          %753 = vmatpush2.xpose.msra.mxu0 0.0
          %754 = vmatprep.subr.mxu0 0.0
          %755 = vmatpush2.xpose.msra.mxu0 0.0
          %756 = vmatprep.subr.mxu0 0.0
          %757 = vmatpush2.xpose.msra.mxu0 0.0
          %758 = vmatprep.subr.mxu0 0.0
          %759 = vmatpush2.xpose.msra.mxu0 0.0
          %760 = vmatprep.subr.mxu0 0.0
          %761 = vmatpush2.xpose.msra.mxu0 0.0
          %762 = vmatprep.mubr.f32.mxu0 0.0
          %763 = vmatmul.mubr.f32.gmra.mxu0 %v690
          %v764 = vpop.f32.mrf.mxu0
          %v765 = vadd.f32 0.0, %v764
          %v766 = vpop.f32.mrf.mxu0
          %767 = vdwg.mxu0
          %vm768 = vcmask 122880
          %769 = vst.msk [vmem:[#allocation5] sm:$0x1] %vm768, %v765
        $region84: #{visit_graph_transformer.1} parent=75 // pred_fallthru
          _
        %v770 = vld [vmem:[%s475] sm:$0xff]
        %s771 = smul.u32 %s31, 8
        %s772 = scalar_lea.vmem [#allocation2], %s771
        %v773 = vld [vmem:[%s772] sm:$0xff]
        %v774 = vld [vmem:[#allocation2] sm:$0xff]
        %v775 = vld [vmem:[#allocation2 + $0x8] sm:$0xff]
        %v776 = vpack.c.bf16 %v775, %v774
        // Predicated region
        $region85: #{visit_graph_transformer.1} parent=75 // pred_check
          %p777 = pneg %p481
        $region86: #{visit_graph_transformer.1} parent=75 // pred_check_branch
          %779 = sbr.rel (%p777) target = $region88
        $region87: #{visit_graph_transformer.1} parent=75 // pred_region
          %v780 = vld [vmem:[%s5] sm:$0xff]
          %v781 = vld [vmem:[%s5 + $0x8] sm:$0xff]
          %v782 = vld [vmem:[%s5 + $0x10] sm:$0xff]
          %v783 = vld [vmem:[%s5 + $0x18] sm:$0xff]
          %vm784 = vcmask 261120
          %v786 = vsel %vm784, %v773, 0
          %788 = vmatprep.subr.mxu0 0.0
          %789 = vmatpush1.msra.mxu0 0.0
          %790 = vmatprep.subr.mxu0 0.0
          %791 = vmatpush1.msra.mxu0 0.0
          %792 = vmatprep.subr.mxu0 0.0
          %793 = vmatpush1.msra.mxu0 0.0
          %794 = vmatprep.subr.mxu0 0.0
          %795 = vmatpush1.msra.mxu0 0.0
          %796 = vmatprep.subr.mxu0 0.0
          %797 = vmatpush1.msra.mxu0 0.0
          %798 = vmatprep.subr.mxu0 0.0
          %799 = vmatpush1.msra.mxu0 0.0
          %800 = vmatprep.subr.mxu0 0.0
          %801 = vmatpush1.msra.mxu0 0.0
          %802 = vmatprep.subr.mxu0 0.0
          %803 = vmatpush1.msra.mxu0 0.0
          %804 = vmatprep.subr.mxu0 0.0
          %805 = vmatpush1.msra.mxu0 0.0
          %806 = vmatprep.subr.mxu0 0.0
          %807 = vmatpush1.msra.mxu0 0.0
          %808 = vmatprep.subr.mxu0 0.0
          %809 = vmatpush1.msra.mxu0 0.0
          %810 = vmatprep.subr.mxu0 0.0
          %811 = vmatpush1.msra.mxu0 0.0
          %812 = vmatprep.subr.mxu0 0.0
          %813 = vmatpush1.msra.mxu0 %v783
          %814 = vmatprep.subr.mxu0 0.0
          %815 = vmatpush1.msra.mxu0 %v782
          %816 = vmatprep.subr.mxu0 0.0
          %817 = vmatpush1.msra.mxu0 %v781
          %818 = vmatprep.subr.mxu0 0.0
          %819 = vmatpush1.msra.mxu0 %v780
          %820 = vmatprep.subr.mxu0 0.0
          %821 = vmatpush2.msra.mxu0 0.0
          %822 = vmatprep.subr.mxu0 0.0
          %823 = vmatpush2.msra.mxu0 0.0
          %824 = vmatprep.subr.mxu0 0.0
          %825 = vmatpush2.msra.mxu0 0.0
          %826 = vmatprep.subr.mxu0 0.0
          %827 = vmatpush2.msra.mxu0 0.0
          %828 = vmatprep.subr.mxu0 0.0
          %829 = vmatpush2.msra.mxu0 0.0
          %830 = vmatprep.subr.mxu0 0.0
          %831 = vmatpush2.msra.mxu0 0.0
          %832 = vmatprep.subr.mxu0 0.0
          %833 = vmatpush2.msra.mxu0 0.0
          %834 = vmatprep.subr.mxu0 0.0
          %835 = vmatpush2.msra.mxu0 0.0
          %836 = vmatprep.subr.mxu0 0.0
          %837 = vmatpush2.msra.mxu0 0.0
          %838 = vmatprep.subr.mxu0 0.0
          %839 = vmatpush2.msra.mxu0 0.0
          %840 = vmatprep.subr.mxu0 0.0
          %841 = vmatpush2.msra.mxu0 0.0
          %842 = vmatprep.subr.mxu0 0.0
          %843 = vmatpush2.msra.mxu0 0.0
          %844 = vmatprep.subr.mxu0 0.0
          %845 = vmatpush2.msra.mxu0 0.0
          %846 = vmatprep.subr.mxu0 0.0
          %847 = vmatpush2.msra.mxu0 0.0
          %848 = vmatprep.subr.mxu0 0.0
          %849 = vmatpush2.msra.mxu0 0.0
          %850 = vmatprep.subr.mxu0 0.0
          %851 = vmatpush2.msra.mxu0 0.0
          %852 = vmatprep.mubr.f32.mxu0 0.0
          %853 = vmatmul.mubr.f32.gmra.mxu0 %v786
          %v854 = vpop.f32.mrf.mxu0
          %v855 = vadd.f32 0.0, %v854
          %v856 = vpop.f32.mrf.mxu0
          %857 = vdwg.mxu0
          %v858 = vlaneseq
          %v859 = vshrl.u32 %v858, 7
          %v860 = vsub.s32 0, %v859
          %v861 = vrot.slane %v855, %v860
          %863 = vbcast.lane.b32.xlu0 %v861, 256
          %v864 = vpop.permute.xlu0 %863
          %v865 = vlaneseq
          %v866 = vshrl.u32 %v865, 7
          %v867 = vsub.s32 1, %v866
          %v868 = vrot.slane %v855, %v867
          %870 = vbcast.lane.b32.xlu0 %v868, 256
          %v871 = vpop.permute.xlu0 %870
          %v872 = vlaneseq
          %v873 = vshrl.u32 %v872, 7
          %v874 = vsub.s32 2, %v873
          %v875 = vrot.slane %v855, %v874
          %877 = vbcast.lane.b32.xlu0 %v875, 256
          %v878 = vpop.permute.xlu0 %877
          %v879 = vlaneseq
          %v880 = vshrl.u32 %v879, 7
          %v881 = vsub.s32 3, %v880
          %v882 = vrot.slane %v855, %v881
          %884 = vbcast.lane.b32.xlu0 %v882, 256
          %v885 = vpop.permute.xlu0 %884
          %v886 = vlaneseq
          %v887 = vshrl.u32 %v886, 7
          %v888 = vsub.s32 4, %v887
          %v889 = vrot.slane %v855, %v888
          %891 = vbcast.lane.b32.xlu0 %v889, 256
          %v892 = vpop.permute.xlu0 %891
          %v893 = vlaneseq
          %v894 = vshrl.u32 %v893, 7
          %v895 = vsub.s32 5, %v894
          %v896 = vrot.slane %v855, %v895
          %898 = vbcast.lane.b32.xlu0 %v896, 256
          %v899 = vpop.permute.xlu0 %898
          %v900 = vlaneseq
          %v901 = vshrl.u32 %v900, 7
          %v902 = vsub.s32 6, %v901
          %v903 = vrot.slane %v855, %v902
          %905 = vbcast.lane.b32.xlu0 %v903, 256
          %v906 = vpop.permute.xlu0 %905
          %v907 = vlaneseq
          %v908 = vshrl.u32 %v907, 7
          %v909 = vsub.s32 7, %v908
          %v910 = vrot.slane %v855, %v909
          %912 = vbcast.lane.b32.xlu0 %v910, 256
          %v913 = vpop.permute.xlu0 %912
          %v914 = vld [vmem:[#allocation4] sm:$0xf]
          %v915 = vadd.f32 %v864, %v914
          %v916 = vadd.f32 %v871, %v914
          %v917 = vadd.f32 %v878, %v914
          %v918 = vadd.f32 %v885, %v914
          %v919 = vadd.f32 %v892, %v914
          %v920 = vadd.f32 %v899, %v914
          %v921 = vadd.f32 %v906, %v914
          %v922 = vadd.f32 %v913, %v914
          %vm923 = vcmp.gt.f32.partialorder %v915, 0.0
          %vm924 = vcmp.gt.f32.partialorder %v916, 0.0
          %vm925 = vcmp.gt.f32.partialorder %v917, 0.0
          %vm926 = vcmp.gt.f32.partialorder %v918, 0.0
          %vm927 = vcmp.gt.f32.partialorder %v919, 0.0
          %vm928 = vcmp.gt.f32.partialorder %v920, 0.0
          %vm929 = vcmp.gt.f32.partialorder %v921, 0.0
          %vm930 = vcmp.gt.f32.partialorder %v922, 0.0
          %v931 = vmul.f32 %v915, 0.2
          %v932 = vmul.f32 %v916, 0.2
          %v933 = vmul.f32 %v917, 0.2
          %v934 = vmul.f32 %v918, 0.2
          %v935 = vmul.f32 %v919, 0.2
          %v936 = vmul.f32 %v920, 0.2
          %v937 = vmul.f32 %v921, 0.2
          %v938 = vmul.f32 %v922, 0.2
          %v939 = vsel %vm923, %v915, %v931
          %v940 = vsel %vm924, %v916, %v932
          %v941 = vsel %vm925, %v917, %v933
          %v942 = vsel %vm926, %v918, %v934
          %v943 = vsel %vm927, %v919, %v935
          %v944 = vsel %vm928, %v920, %v936
          %v945 = vsel %vm929, %v921, %v937
          %v946 = vsel %vm930, %v922, %v938
          %v948 = vcombine.high %v770, %v770
          %v950 = vunpack.c.l.s4 1966171168
          %v951 = vunpack.c.0.s8 %v950
          %v952 = vlaneseq
          %v953 = vshrl.u32 %v952, 7
          %v954 = vsub.s32 %v951, %v953
          %v955 = vrot.slane %v770, %v954
          %v957 = vunpack.c.l.s4 1966171168
          %v958 = vunpack.c.0.s8 %v957
          %v959 = vlaneseq
          %v960 = vshrl.u32 %v959, 7
          %v961 = vsub.s32 %v958, %v960
          %v962 = vrot.slane %v948, %v961
          %v963 = vcombine.high %v955, %v955
          %v964 = vcombine.high %v962, %v962
          %v966 = vunpack.c.l.s4 1966171168
          %v967 = vunpack.c.0.s8 %v966
          %v968 = vlaneseq
          %v969 = vshrl.u32 %v968, 7
          %v970 = vsub.s32 %v967, %v969
          %v971 = vrot.slane %v955, %v970
          %v973 = vunpack.c.l.s4 1966171168
          %v974 = vunpack.c.0.s8 %v973
          %v975 = vlaneseq
          %v976 = vshrl.u32 %v975, 7
          %v977 = vsub.s32 %v974, %v976
          %v978 = vrot.slane %v962, %v977
          %v980 = vunpack.c.l.s4 1966171168
          %v981 = vunpack.c.0.s8 %v980
          %v982 = vlaneseq
          %v983 = vshrl.u32 %v982, 7
          %v984 = vsub.s32 %v981, %v983
          %v985 = vrot.slane %v963, %v984
          %v987 = vunpack.c.l.s4 1966171168
          %v988 = vunpack.c.0.s8 %v987
          %v989 = vlaneseq
          %v990 = vshrl.u32 %v989, 7
          %v991 = vsub.s32 %v988, %v990
          %v992 = vrot.slane %v964, %v991
          %v993 = vcombine.high %v971, %v971
          %v994 = vcombine.high %v978, %v978
          %v995 = vcombine.high %v985, %v985
          %v996 = vcombine.high %v992, %v992
          %v997 = vlaneseq
          %v998 = vshrl.u32 %v997, 7
          %v999 = vsub.s32 0, %v998
          %v1000 = vrot.slane %v971, %v999
          %v1001 = vlaneseq
          %v1002 = vshrl.u32 %v1001, 7
          %v1003 = vsub.s32 0, %v1002
          %v1004 = vrot.slane %v985, %v1003
          %v1005 = vlaneseq
          %v1006 = vshrl.u32 %v1005, 7
          %v1007 = vsub.s32 0, %v1006
          %v1008 = vrot.slane %v993, %v1007
          %v1009 = vlaneseq
          %v1010 = vshrl.u32 %v1009, 7
          %v1011 = vsub.s32 0, %v1010
          %v1012 = vrot.slane %v995, %v1011
          %v1013 = vlaneseq
          %v1014 = vshrl.u32 %v1013, 7
          %v1015 = vsub.s32 0, %v1014
          %v1016 = vrot.slane %v978, %v1015
          %v1017 = vlaneseq
          %v1018 = vshrl.u32 %v1017, 7
          %v1019 = vsub.s32 0, %v1018
          %v1020 = vrot.slane %v992, %v1019
          %v1021 = vlaneseq
          %v1022 = vshrl.u32 %v1021, 7
          %v1023 = vsub.s32 0, %v1022
          %v1024 = vrot.slane %v994, %v1023
          %v1025 = vlaneseq
          %v1026 = vshrl.u32 %v1025, 7
          %v1027 = vsub.s32 0, %v1026
          %v1028 = vrot.slane %v996, %v1027
          %v1037 = vadd.f32 %v939, %v1000
          %v1038 = vadd.f32 %v940, %v1004
          %v1039 = vadd.f32 %v941, %v1008
          %v1040 = vadd.f32 %v942, %v1012
          %v1041 = vadd.f32 %v943, %v1016
          %v1042 = vadd.f32 %v944, %v1020
          %v1043 = vadd.f32 %v945, %v1024
          %v1044 = vadd.f32 %v946, %v1028
          %vm1045 = vcmask 125952
          %v1046 = vsel %vm1045, %v1037, -inf
          %1047 = vmax.xlane.f32.xlu0 %v1046
          %v1048 = vpop.xlane.xlu0 %1047
          %v1049 = vsel %vm1045, %v1038, -inf
          %1050 = vmax.xlane.f32.xlu0 %v1049
          %v1051 = vpop.xlane.xlu0 %1050
          %v1052 = vsel %vm1045, %v1039, -inf
          %1053 = vmax.xlane.f32.xlu0 %v1052
          %v1054 = vpop.xlane.xlu0 %1053
          %v1055 = vsel %vm1045, %v1040, -inf
          %1056 = vmax.xlane.f32.xlu0 %v1055
          %v1057 = vpop.xlane.xlu0 %1056
          %v1058 = vsel %vm1045, %v1041, -inf
          %1059 = vmax.xlane.f32.xlu0 %v1058
          %v1060 = vpop.xlane.xlu0 %1059
          %v1061 = vsel %vm1045, %v1042, -inf
          %1062 = vmax.xlane.f32.xlu0 %v1061
          %v1063 = vpop.xlane.xlu0 %1062
          %v1064 = vsel %vm1045, %v1043, -inf
          %1065 = vmax.xlane.f32.xlu0 %v1064
          %v1066 = vpop.xlane.xlu0 %1065
          %v1067 = vsel %vm1045, %v1044, -inf
          %1068 = vmax.xlane.f32.xlu0 %v1067
          %v1069 = vpop.xlane.xlu0 %1068
          %v1070 = vsub.f32 %v1037, %v1048
          %v1071 = vsub.f32 %v1038, %v1051
          %v1072 = vsub.f32 %v1039, %v1054
          %v1073 = vsub.f32 %v1040, %v1057
          %v1074 = vsub.f32 %v1041, %v1060
          %v1075 = vsub.f32 %v1042, %v1063
          %v1076 = vsub.f32 %v1043, %v1066
          %v1077 = vsub.f32 %v1044, %v1069
          %v1078 = vmul.f32 %v1070, 1.442695
          %v1079 = vpow.pop %v1078
          %v1080 = vmul.f32 %v1071, 1.442695
          %v1081 = vpow.pop %v1080
          %v1082 = vmul.f32 %v1072, 1.442695
          %v1083 = vpow.pop %v1082
          %v1084 = vmul.f32 %v1073, 1.442695
          %v1085 = vpow.pop %v1084
          %v1086 = vmul.f32 %v1074, 1.442695
          %v1087 = vpow.pop %v1086
          %v1088 = vmul.f32 %v1075, 1.442695
          %v1089 = vpow.pop %v1088
          %v1090 = vmul.f32 %v1076, 1.442695
          %v1091 = vpow.pop %v1090
          %v1092 = vmul.f32 %v1077, 1.442695
          %v1093 = vpow.pop %v1092
          %v1094 = vsel %vm1045, %v1079, 0.0
          %1095 = vadd.xlane.f32.xlu0 %v1094
          %v1096 = vpop.xlane.xlu0 %1095
          %v1097 = vsel %vm1045, %v1081, 0.0
          %1098 = vadd.xlane.f32.xlu0 %v1097
          %v1099 = vpop.xlane.xlu0 %1098
          %v1100 = vsel %vm1045, %v1083, 0.0
          %1101 = vadd.xlane.f32.xlu0 %v1100
          %v1102 = vpop.xlane.xlu0 %1101
          %v1103 = vsel %vm1045, %v1085, 0.0
          %1104 = vadd.xlane.f32.xlu0 %v1103
          %v1105 = vpop.xlane.xlu0 %1104
          %v1106 = vsel %vm1045, %v1087, 0.0
          %1107 = vadd.xlane.f32.xlu0 %v1106
          %v1108 = vpop.xlane.xlu0 %1107
          %v1109 = vsel %vm1045, %v1089, 0.0
          %1110 = vadd.xlane.f32.xlu0 %v1109
          %v1111 = vpop.xlane.xlu0 %1110
          %v1112 = vsel %vm1045, %v1091, 0.0
          %1113 = vadd.xlane.f32.xlu0 %v1112
          %v1114 = vpop.xlane.xlu0 %1113
          %v1115 = vsel %vm1045, %v1093, 0.0
          %1116 = vadd.xlane.f32.xlu0 %v1115
          %v1117 = vpop.xlane.xlu0 %1116
          %v1118 = vrcp.pop %v1096
          %v1119 = vrcp.pop %v1099
          %v1120 = vrcp.pop %v1102
          %v1121 = vrcp.pop %v1105
          %v1122 = vrcp.pop %v1108
          %v1123 = vrcp.pop %v1111
          %v1124 = vrcp.pop %v1114
          %v1125 = vrcp.pop %v1117
          %v1126 = vmul.f32 %v1079, %v1118
          %v1127 = vmul.f32 %v1081, %v1119
          %v1128 = vmul.f32 %v1083, %v1120
          %v1129 = vmul.f32 %v1085, %v1121
          %v1130 = vmul.f32 %v1087, %v1122
          %v1131 = vmul.f32 %v1089, %v1123
          %v1132 = vmul.f32 %v1091, %v1124
          %v1133 = vmul.f32 %v1093, %v1125
          %v1142 = vcombine.low %v1126, %v1127
          %v1143 = vcombine.low %v1128, %v1129
          %v1144 = vcombine.low %v1130, %v1131
          %v1145 = vcombine.low %v1132, %v1133
          %v1150 = vpack.c.bf16 %v1143, %v1142
          %v1151 = vpack.c.bf16 %v1145, %v1144
          %vm1152 = vcmask 130048
          %v1154 = vsel %vm1152, %v1150, 0
          %v1157 = vsel %vm1152, %v1151, 0
          %1159 = vmatprep.subr.bf16.mxu0 0
          %1160 = vmatpush1.bf16.msra.mxu0 0
          %1161 = vmatprep.subr.bf16.mxu0 0
          %1162 = vmatpush1.bf16.msra.mxu0 0
          %1163 = vmatprep.subr.bf16.mxu0 0
          %1164 = vmatpush1.bf16.msra.mxu0 0
          %1165 = vmatprep.subr.bf16.mxu0 0
          %1166 = vmatpush1.bf16.msra.mxu0 0
          %1167 = vmatprep.subr.bf16.mxu0 0
          %1168 = vmatpush1.bf16.msra.mxu0 0
          %1169 = vmatprep.subr.bf16.mxu0 0
          %1170 = vmatpush1.bf16.msra.mxu0 0
          %1171 = vmatprep.subr.bf16.mxu0 0
          %1172 = vmatpush1.bf16.msra.mxu0 0
          %1173 = vmatprep.subr.bf16.mxu0 0
          %1174 = vmatpush1.bf16.msra.mxu0 %v776
          %1175 = vmatprep.subr.bf16.mxu0 0
          %1176 = vmatpush2.bf16.msra.mxu0 0
          %1177 = vmatprep.subr.bf16.mxu0 0
          %1178 = vmatpush2.bf16.msra.mxu0 0
          %1179 = vmatprep.subr.bf16.mxu0 0
          %1180 = vmatpush2.bf16.msra.mxu0 0
          %1181 = vmatprep.subr.bf16.mxu0 0
          %1182 = vmatpush2.bf16.msra.mxu0 0
          %1183 = vmatprep.subr.bf16.mxu0 0
          %1184 = vmatpush2.bf16.msra.mxu0 0
          %1185 = vmatprep.subr.bf16.mxu0 0
          %1186 = vmatpush2.bf16.msra.mxu0 0
          %1187 = vmatprep.subr.bf16.mxu0 0
          %1188 = vmatpush2.bf16.msra.mxu0 0
          %1189 = vmatprep.subr.bf16.mxu0 0
          %1190 = vmatpush2.bf16.msra.mxu0 0
          %1191 = vmatprep.mubr.bf16.mxu0 0
          %1192 = vmatmul.mubr.bf16.gmra.mxu0 %v1154
          %v1193 = vpop.f32.mrf.mxu0
          %v1194 = vadd.f32 0.0, %v1193
          %v1195 = vpop.f32.mrf.mxu0
          %v1196 = vpop.f32.mrf.mxu0
          %v1197 = vadd.f32 0.0, %v1196
          %v1198 = vpop.f32.mrf.mxu0
          %1199 = vmatprep.mubr.bf16.mxu0 0
          %1200 = vmatmul.mubr.bf16.gmra.mxu0 %v1157
          %v1201 = vpop.f32.mrf.mxu0
          %v1202 = vadd.f32 0.0, %v1201
          %v1203 = vpop.f32.mrf.mxu0
          %v1204 = vpop.f32.mrf.mxu0
          %v1205 = vadd.f32 0.0, %v1204
          %v1206 = vpop.f32.mrf.mxu0
          %1207 = vdwg.mxu0
          %v1212 = vcombine.high %v1194, %v1194
          %v1213 = vcombine.high %v1197, %v1197
          %v1214 = vcombine.high %v1202, %v1202
          %v1215 = vcombine.high %v1205, %v1205
          %v1220 = vld [vmem:[%s13] sm:$0xf]
          %v1221 = vmul.f32 %v1194, %v1220
          %v1222 = vmul.f32 %v1212, %v1220
          %v1223 = vmul.f32 %v1197, %v1220
          %v1224 = vmul.f32 %v1213, %v1220
          %v1225 = vmul.f32 %v1202, %v1220
          %v1226 = vmul.f32 %v1214, %v1220
          %v1227 = vmul.f32 %v1205, %v1220
          %v1228 = vmul.f32 %v1215, %v1220
          %vm1229 = vcmask 257024
          %v1230 = vsel %vm1229, %v1221, 0.0
          %v1231 = vrot.slane %v1230, 4
          %v1232 = vadd.f32 %v1230, %v1231
          %v1233 = vrot.slane %v1232, 2
          %v1234 = vadd.f32 %v1232, %v1233
          %v1235 = vrot.slane %v1234, 1
          %v1236 = vadd.f32 %v1234, %v1235
          %v1237 = vsel %vm1229, %v1222, 0.0
          %v1238 = vrot.slane %v1237, 4
          %v1239 = vadd.f32 %v1237, %v1238
          %v1240 = vrot.slane %v1239, 2
          %v1241 = vadd.f32 %v1239, %v1240
          %v1242 = vrot.slane %v1241, 1
          %v1243 = vadd.f32 %v1241, %v1242
          %v1244 = vsel %vm1229, %v1223, 0.0
          %v1245 = vrot.slane %v1244, 4
          %v1246 = vadd.f32 %v1244, %v1245
          %v1247 = vrot.slane %v1246, 2
          %v1248 = vadd.f32 %v1246, %v1247
          %v1249 = vrot.slane %v1248, 1
          %v1250 = vadd.f32 %v1248, %v1249
          %v1251 = vsel %vm1229, %v1224, 0.0
          %v1252 = vrot.slane %v1251, 4
          %v1253 = vadd.f32 %v1251, %v1252
          %v1254 = vrot.slane %v1253, 2
          %v1255 = vadd.f32 %v1253, %v1254
          %v1256 = vrot.slane %v1255, 1
          %v1257 = vadd.f32 %v1255, %v1256
          %v1258 = vsel %vm1229, %v1225, 0.0
          %v1259 = vrot.slane %v1258, 4
          %v1260 = vadd.f32 %v1258, %v1259
          %v1261 = vrot.slane %v1260, 2
          %v1262 = vadd.f32 %v1260, %v1261
          %v1263 = vrot.slane %v1262, 1
          %v1264 = vadd.f32 %v1262, %v1263
          %v1265 = vsel %vm1229, %v1226, 0.0
          %v1266 = vrot.slane %v1265, 4
          %v1267 = vadd.f32 %v1265, %v1266
          %v1268 = vrot.slane %v1267, 2
          %v1269 = vadd.f32 %v1267, %v1268
          %v1270 = vrot.slane %v1269, 1
          %v1271 = vadd.f32 %v1269, %v1270
          %v1272 = vsel %vm1229, %v1227, 0.0
          %v1273 = vrot.slane %v1272, 4
          %v1274 = vadd.f32 %v1272, %v1273
          %v1275 = vrot.slane %v1274, 2
          %v1276 = vadd.f32 %v1274, %v1275
          %v1277 = vrot.slane %v1276, 1
          %v1278 = vadd.f32 %v1276, %v1277
          %v1279 = vsel %vm1229, %v1228, 0.0
          %v1280 = vrot.slane %v1279, 4
          %v1281 = vadd.f32 %v1279, %v1280
          %v1282 = vrot.slane %v1281, 2
          %v1283 = vadd.f32 %v1281, %v1282
          %v1284 = vrot.slane %v1283, 1
          %v1285 = vadd.f32 %v1283, %v1284
          %v1286 = vld [vmem:[%s6] sm:$0x1]
          %v1288 = vlaneseq
          %v1289 = vshrl.u32 %v1288, 7
          %v1290 = vsub.s32 0, %v1289
          %v1291 = vrot.slane %v1286, %v1290
          %v1293 = vadd.f32 %v1236, %v1291
          %v1294 = vadd.f32 %v1243, %v1291
          %v1295 = vadd.f32 %v1250, %v1291
          %v1296 = vadd.f32 %v1257, %v1291
          %v1297 = vadd.f32 %v1264, %v1291
          %v1298 = vadd.f32 %v1271, %v1291
          %v1299 = vadd.f32 %v1278, %v1291
          %v1300 = vadd.f32 %v1285, %v1291
          %v1301 = vmax.f32 %v1293, 0.0
          %v1302 = vmax.f32 %v1294, 0.0
          %v1303 = vmax.f32 %v1295, 0.0
          %v1304 = vmax.f32 %v1296, 0.0
          %v1305 = vmax.f32 %v1297, 0.0
          %v1306 = vmax.f32 %v1298, 0.0
          %v1307 = vmax.f32 %v1299, 0.0
          %v1308 = vmax.f32 %v1300, 0.0
          %v1317 = vrot.slane %v1302, 7
          %vm1318 = vcmask 1041409
          %v1319 = vsel %vm1318, %v1317, %v1301
          %v1320 = vrot.slane %v1303, 6
          %vm1321 = vcmask 1042434
          %v1322 = vsel %vm1321, %v1320, %v1319
          %v1323 = vrot.slane %v1304, 5
          %vm1324 = vcmask 1043459
          %v1325 = vsel %vm1324, %v1323, %v1322
          %v1326 = vrot.slane %v1305, 4
          %vm1327 = vcmask 1044484
          %v1328 = vsel %vm1327, %v1326, %v1325
          %v1329 = vrot.slane %v1306, 3
          %vm1330 = vcmask 1045509
          %v1331 = vsel %vm1330, %v1329, %v1328
          %v1332 = vrot.slane %v1307, 2
          %vm1333 = vcmask 1046534
          %v1334 = vsel %vm1333, %v1332, %v1331
          %v1335 = vrot.slane %v1308, 1
          %vm1336 = vcmask 1047559
          %v1337 = vsel %vm1336, %v1335, %v1334
          %s1339 = scalar_lea.vmem [#allocation3], %s771
          %1340 = vst.msk [vmem:[%s1339] sm:$0xff] %vm784, %v1337
        $region88: #{visit_graph_transformer.1} parent=75 // pred_fallthru
          _
        // Predicated region
        $region89: #{visit_graph_transformer.1} parent=75 // pred_check
          %p1341 = pneg %p627
        $region90: #{visit_graph_transformer.1} parent=75 // pred_check_branch
          %1343 = sbr.rel (%p1341) target = $region92
        $region91: #{visit_graph_transformer.1} parent=75 // pred_region
          %v1344 = vld [vmem:[%s9] sm:$0xff]
          %v1345 = vld [vmem:[%s9 + $0x8] sm:$0xff]
          %v1346 = vld [vmem:[%s9 + $0x10] sm:$0xff]
          %v1347 = vld [vmem:[%s9 + $0x18] sm:$0xff]
          %vm1348 = vcmask 261120
          %v1350 = vsel %vm1348, %v773, 0
          %1352 = vmatprep.subr.mxu0 0.0
          %1353 = vmatpush1.msra.mxu0 0.0
          %1354 = vmatprep.subr.mxu0 0.0
          %1355 = vmatpush1.msra.mxu0 0.0
          %1356 = vmatprep.subr.mxu0 0.0
          %1357 = vmatpush1.msra.mxu0 0.0
          %1358 = vmatprep.subr.mxu0 0.0
          %1359 = vmatpush1.msra.mxu0 0.0
          %1360 = vmatprep.subr.mxu0 0.0
          %1361 = vmatpush1.msra.mxu0 0.0
          %1362 = vmatprep.subr.mxu0 0.0
          %1363 = vmatpush1.msra.mxu0 0.0
          %1364 = vmatprep.subr.mxu0 0.0
          %1365 = vmatpush1.msra.mxu0 0.0
          %1366 = vmatprep.subr.mxu0 0.0
          %1367 = vmatpush1.msra.mxu0 0.0
          %1368 = vmatprep.subr.mxu0 0.0
          %1369 = vmatpush1.msra.mxu0 0.0
          %1370 = vmatprep.subr.mxu0 0.0
          %1371 = vmatpush1.msra.mxu0 0.0
          %1372 = vmatprep.subr.mxu0 0.0
          %1373 = vmatpush1.msra.mxu0 0.0
          %1374 = vmatprep.subr.mxu0 0.0
          %1375 = vmatpush1.msra.mxu0 0.0
          %1376 = vmatprep.subr.mxu0 0.0
          %1377 = vmatpush1.msra.mxu0 %v1347
          %1378 = vmatprep.subr.mxu0 0.0
          %1379 = vmatpush1.msra.mxu0 %v1346
          %1380 = vmatprep.subr.mxu0 0.0
          %1381 = vmatpush1.msra.mxu0 %v1345
          %1382 = vmatprep.subr.mxu0 0.0
          %1383 = vmatpush1.msra.mxu0 %v1344
          %1384 = vmatprep.subr.mxu0 0.0
          %1385 = vmatpush2.msra.mxu0 0.0
          %1386 = vmatprep.subr.mxu0 0.0
          %1387 = vmatpush2.msra.mxu0 0.0
          %1388 = vmatprep.subr.mxu0 0.0
          %1389 = vmatpush2.msra.mxu0 0.0
          %1390 = vmatprep.subr.mxu0 0.0
          %1391 = vmatpush2.msra.mxu0 0.0
          %1392 = vmatprep.subr.mxu0 0.0
          %1393 = vmatpush2.msra.mxu0 0.0
          %1394 = vmatprep.subr.mxu0 0.0
          %1395 = vmatpush2.msra.mxu0 0.0
          %1396 = vmatprep.subr.mxu0 0.0
          %1397 = vmatpush2.msra.mxu0 0.0
          %1398 = vmatprep.subr.mxu0 0.0
          %1399 = vmatpush2.msra.mxu0 0.0
          %1400 = vmatprep.subr.mxu0 0.0
          %1401 = vmatpush2.msra.mxu0 0.0
          %1402 = vmatprep.subr.mxu0 0.0
          %1403 = vmatpush2.msra.mxu0 0.0
          %1404 = vmatprep.subr.mxu0 0.0
          %1405 = vmatpush2.msra.mxu0 0.0
          %1406 = vmatprep.subr.mxu0 0.0
          %1407 = vmatpush2.msra.mxu0 0.0
          %1408 = vmatprep.subr.mxu0 0.0
          %1409 = vmatpush2.msra.mxu0 0.0
          %1410 = vmatprep.subr.mxu0 0.0
          %1411 = vmatpush2.msra.mxu0 0.0
          %1412 = vmatprep.subr.mxu0 0.0
          %1413 = vmatpush2.msra.mxu0 0.0
          %1414 = vmatprep.subr.mxu0 0.0
          %1415 = vmatpush2.msra.mxu0 0.0
          %1416 = vmatprep.mubr.f32.mxu0 0.0
          %1417 = vmatmul.mubr.f32.gmra.mxu0 %v1350
          %v1418 = vpop.f32.mrf.mxu0
          %v1419 = vadd.f32 0.0, %v1418
          %v1420 = vpop.f32.mrf.mxu0
          %1421 = vdwg.mxu0
          %v1422 = vld [vmem:[#allocation5] sm:$0x1]
          %1424 = vset.pattern.permute.xlu0 0
          %1425 = vperm.xlu0 %1424, %v1419
          %v1426 = vpop.permute.xlu0 %1425
          %v1429 = vlaneseq
          %v1430 = vshrl.u32 %v1429, 7
          %v1431 = vsub.s32 0, %v1430
          %v1432 = vrot.slane %v1422, %v1431
          %v1434 = vadd.f32 %v1426, %v1432
          %vm1435 = vcmp.gt.f32.partialorder %v1434, 0.0
          %v1436 = vmul.f32 %v1434, 0.2
          %v1437 = vsel %vm1435, %v1434, %v1436
          %v1438 = vadd.f32 %v1437, %v770
          %vm1439 = vcmask 130048
          %v1440 = vsel %vm1439, %v1438, -inf
          %1441 = vmax.xlane.f32.xlu0 %v1440
          %v1442 = vpop.xlane.xlu0 %1441
          %v1443 = vsub.f32 %v1438, %v1442
          %v1444 = vmul.f32 %v1443, 1.442695
          %v1445 = vpow.pop %v1444
          %v1446 = vsel %vm1439, %v1445, 0.0
          %1447 = vadd.xlane.f32.xlu0 %v1446
          %v1448 = vpop.xlane.xlu0 %1447
          %v1449 = vrcp.pop %v1448
          %v1450 = vmul.f32 %v1445, %v1449
          %v1451 = vpack.c.bf16 %v1450, %v1450
          %v1452 = vld [vmem:[%s10] sm:$0x1]
          %v1454 = vlaneseq
          %v1455 = vshrl.u32 %v1454, 7
          %v1456 = vsub.s32 0, %v1455
          %v1457 = vrot.slane %v1452, %v1456
          %v1460 = vsel %vm1439, %v1451, 0
          %1462 = vmatprep.subr.bf16.mxu0 0
          %1463 = vmatpush1.bf16.msra.mxu0 0
          %1464 = vmatprep.subr.bf16.mxu0 0
          %1465 = vmatpush1.bf16.msra.mxu0 0
          %1466 = vmatprep.subr.bf16.mxu0 0
          %1467 = vmatpush1.bf16.msra.mxu0 0
          %1468 = vmatprep.subr.bf16.mxu0 0
          %1469 = vmatpush1.bf16.msra.mxu0 0
          %1470 = vmatprep.subr.bf16.mxu0 0
          %1471 = vmatpush1.bf16.msra.mxu0 0
          %1472 = vmatprep.subr.bf16.mxu0 0
          %1473 = vmatpush1.bf16.msra.mxu0 0
          %1474 = vmatprep.subr.bf16.mxu0 0
          %1475 = vmatpush1.bf16.msra.mxu0 0
          %1476 = vmatprep.subr.bf16.mxu0 0
          %1477 = vmatpush1.bf16.msra.mxu0 %v776
          %1478 = vmatprep.subr.bf16.mxu0 0
          %1479 = vmatpush2.bf16.msra.mxu0 0
          %1480 = vmatprep.subr.bf16.mxu0 0
          %1481 = vmatpush2.bf16.msra.mxu0 0
          %1482 = vmatprep.subr.bf16.mxu0 0
          %1483 = vmatpush2.bf16.msra.mxu0 0
          %1484 = vmatprep.subr.bf16.mxu0 0
          %1485 = vmatpush2.bf16.msra.mxu0 0
          %1486 = vmatprep.subr.bf16.mxu0 0
          %1487 = vmatpush2.bf16.msra.mxu0 0
          %1488 = vmatprep.subr.bf16.mxu0 0
          %1489 = vmatpush2.bf16.msra.mxu0 0
          %1490 = vmatprep.subr.bf16.mxu0 0
          %1491 = vmatpush2.bf16.msra.mxu0 0
          %1492 = vmatprep.subr.bf16.mxu0 0
          %1493 = vmatpush2.bf16.msra.mxu0 0
          %1494 = vmatprep.mubr.bf16.mxu0 0
          %1495 = vmatmul.mubr.bf16.gmra.mxu0 %v1460
          %v1496 = vpop.f32.mrf.mxu0
          %v1497 = vadd.f32 %v1457, %v1496
          %v1498 = vpop.f32.mrf.mxu0
          %v1499 = vpop.f32.mrf.mxu0
          %v1500 = vpop.f32.mrf.mxu0
          %1501 = vdwg.mxu0
          %v1502 = vsel %vm1348, %v1497, 0.0
          %1503 = vadd.xlane.f32.xlu0 %v1502
          %v1504 = vpop.xlane.xlu0 %1503
          %v1505 = vrcp.pop 32.0
          %v1506 = vmul.f32 %v1504, %v1505
          %v1507 = vsub.f32 %v1497, %v1506
          %v1508 = vmul.f32 %v1507, %v1507
          %v1509 = vsel %vm1348, %v1508, 0.0
          %1510 = vadd.xlane.f32.xlu0 %v1509
          %v1511 = vpop.xlane.xlu0 %1510
          %v1512 = vmul.f32 %v1511, %v1505
          %v1513 = vadd.f32 %v1512, 1e-05
          %v1514 = vrsqrt.pop %v1513
          %v1515 = vmul.f32 %v1507, %v1514
          %v1516 = vld [vmem:[%s11] sm:$0x1]
          %v1518 = vlaneseq
          %v1519 = vshrl.u32 %v1518, 7
          %v1520 = vsub.s32 0, %v1519
          %v1521 = vrot.slane %v1516, %v1520
          %v1523 = vmul.f32 %v1515, %v1521
          %v1524 = vld [vmem:[%s12] sm:$0x1]
          %v1526 = vlaneseq
          %v1527 = vshrl.u32 %v1526, 7
          %v1528 = vsub.s32 0, %v1527
          %v1529 = vrot.slane %v1524, %v1528
          %v1531 = vadd.f32 %v1523, %v1529
          %v1532 = vld [vmem:[#allocation6] sm:$0x3]
          %v1533 = vld [vmem:[%s479] sm:$0xff]
          %v1534 = vpack.c.bf16 %v1533, %v1533
          %v1535 = vpack.c.bf16 %v1531, %v1531
          %1536 = vxpose.xlu0.c.b16.start [1/8] %v1534, 128
          %1537 = vxpose.xlu0.c.b16.cont [2/8] 0, 128
          %1538 = vxpose.xlu0.c.b16.cont [3/8] 0, 128
          %1539 = vxpose.xlu0.c.b16.cont [4/8] 0, 128
          %1540 = vxpose.xlu0.c.b16.cont [5/8] 0, 128
          %1541 = vxpose.xlu0.c.b16.cont [6/8] 0, 128
          %1542 = vxpose.xlu0.c.b16.cont [7/8] 0, 128
          %1543 = vxpose.xlu0.c.b16.end [8/8] 0, 128
          %v1544 = vpop.trf.xlu0
          %v1545 = vpop.trf.xlu0
          %v1546 = vpop.trf.xlu0
          %v1547 = vpop.trf.xlu0
          %v1548 = vpop.trf.xlu0
          %v1549 = vpop.trf.xlu0
          %v1550 = vpop.trf.xlu0
          %v1551 = vpop.trf.xlu0
          %vm1552 = vcmask 64512
          %v1554 = vsel %vm1552, %v1544, 0
          %vm1556 = vcmask 1043456
          %v1558 = vsel %vm1556, %v1535, 0
          %1560 = vmatprep.subr.bf16.mxu0 0
          %1561 = vmatpush1.bf16.msra.mxu0 0
          %1562 = vmatprep.subr.bf16.mxu0 0
          %1563 = vmatpush1.bf16.msra.mxu0 0
          %1564 = vmatprep.subr.bf16.mxu0 0
          %1565 = vmatpush1.bf16.msra.mxu0 0
          %1566 = vmatprep.subr.bf16.mxu0 0
          %1567 = vmatpush1.bf16.msra.mxu0 0
          %1568 = vmatprep.subr.bf16.mxu0 0
          %1569 = vmatpush1.bf16.msra.mxu0 0
          %1570 = vmatprep.subr.bf16.mxu0 0
          %1571 = vmatpush1.bf16.msra.mxu0 0
          %1572 = vmatprep.subr.bf16.mxu0 0
          %1573 = vmatpush1.bf16.msra.mxu0 0
          %1574 = vmatprep.subr.bf16.mxu0 0
          %1575 = vmatpush1.bf16.msra.mxu0 %v1558
          %1576 = vmatprep.subr.bf16.mxu0 0
          %1577 = vmatpush2.bf16.msra.mxu0 0
          %1578 = vmatprep.subr.bf16.mxu0 0
          %1579 = vmatpush2.bf16.msra.mxu0 0
          %1580 = vmatprep.subr.bf16.mxu0 0
          %1581 = vmatpush2.bf16.msra.mxu0 0
          %1582 = vmatprep.subr.bf16.mxu0 0
          %1583 = vmatpush2.bf16.msra.mxu0 0
          %1584 = vmatprep.subr.bf16.mxu0 0
          %1585 = vmatpush2.bf16.msra.mxu0 0
          %1586 = vmatprep.subr.bf16.mxu0 0
          %1587 = vmatpush2.bf16.msra.mxu0 0
          %1588 = vmatprep.subr.bf16.mxu0 0
          %1589 = vmatpush2.bf16.msra.mxu0 0
          %1590 = vmatprep.subr.bf16.mxu0 0
          %1591 = vmatpush2.bf16.msra.mxu0 0
          %1592 = vmatprep.mubr.bf16.mxu0 0
          %1593 = vmatmul.mubr.bf16.gmra.mxu0 %v1554
          %v1594 = vpop.f32.mrf.mxu0
          %v1595 = vadd.f32 0.0, %v1594
          %v1596 = vpop.f32.mrf.mxu0
          %v1597 = vpop.f32.mrf.mxu0
          %v1598 = vpop.f32.mrf.mxu0
          %1599 = vdwg.mxu0
          %v1600 = vadd.f32 %v1532, %v1595
          %vm1601 = vcmask 254976
          %1602 = vst.msk [vmem:[#allocation6] sm:$0x3] %vm1601, %v1600
        $region92: #{visit_graph_transformer.1} parent=75 // pred_fallthru
          _
        // Predicated region
        $region93: #{visit_graph_transformer.1} parent=75 // pred_check
          %p1603 = pneg %p355
        $region94: #{visit_graph_transformer.1} parent=75 // pred_check_branch
          %1605 = sbr.rel (%p1603) target = $region96
        $region95: #{visit_graph_transformer.1} parent=75 // pred_region
          %s1607 = ssub.s32 32, 32
          %1608 = vsyncadd [#allocation7], %s1607
          %s1610 = sshll.u32 [#allocation6], 4
          %s1611 = int_to_ptr.vmem [resolvable:$true] %s1610
          %1613 = dma.vmem_to_hbm [thread:$0]  %s1611, 32, %s14, [#allocation7]
        $region96: #{visit_graph_transformer.1} parent=75 // pred_fallthru
          _
        // Predicated region
        $region97: #{visit_graph_transformer.1} parent=75 // pred_check
          %p1614 = pneg %p355
        $region98: #{visit_graph_transformer.1} parent=75 // pred_check_branch
          %1616 = sbr.rel (%p1614) target = $region100
        $region99: #{visit_graph_transformer.1} parent=75 // pred_region
          %1617 = dma.done [#allocation7], 32
        $region100: #{visit_graph_transformer.1} parent=75 // pred_fallthru
          _
      $region76: #{visit_graph_transformer.1} parent=5 // pred_fallthru
        _
      %p1618 = scmp.le.s32.totalorder 2, %s21
      // Predicated region
      $region101: #{visit_graph_transformer.1} parent=5 // pred_check
        %p1619 = pneg %p1618
      $region102: #{visit_graph_transformer.1} parent=5 // pred_check_branch
        %1621 = sbr.rel (%p1619) target = $region104
      $region103: #{visit_graph_transformer.1} parent=5 // pred_region
        %s1622 = ssub.s32 %s21, 2
      $region104: #{visit_graph_transformer.1} parent=5 // pred_fallthru
        _
    $region6: #{visit_graph_transformer.1} parent=1 // loop_footer
      %s25 = sadd.s32 1, %s21
    $region7: #{visit_graph_transformer.1} parent=1 // loop_footer_branch
      %20 = sbr.rel target = $region3
    $region8: #{visit_graph_transformer.1} parent=1 // loop_exit
      _
    %1623 = vsyncpa [#allocation7], 1
    %s1624 = scalar_lea.sflag [#allocation7], 1
    %1625 = vsyncpa %s1624, 1

</llo_original>
